<compile_context>
chip_gen: v7x
topology: tpu7x:2x2x1
jax: 0.10.0
libtpu: 0.0.40
codegen_flags: <defaults>
</compile_context>

<pallas_src>
import jax
import jax.numpy as jnp
from jax.experimental import pallas as pl
from jax.experimental.pallas import tpu as pltpu


def mlp_kernel(x_ref, w1_ref, b1_ref, w2_ref, b2_ref, w3_ref, b3_ref,
               w4_ref, b4_ref, o_ref):
    # Layer 1: Linear(C_in, 512) + ReLU   (Dropout is identity in eval mode)
    x = x_ref[...].astype(jnp.bfloat16)
    h = jnp.dot(x, w1_ref[...], preferred_element_type=jnp.float32) + b1_ref[...]
    h = jnp.maximum(h, 0.0).astype(jnp.bfloat16)
    # Layer 2: Linear(512, 256) + ReLU
    h = jnp.dot(h, w2_ref[...], preferred_element_type=jnp.float32) + b2_ref[...]
    h = jnp.maximum(h, 0.0).astype(jnp.bfloat16)
    # Layer 3: Linear(256, 128) + ReLU
    h = jnp.dot(h, w3_ref[...], preferred_element_type=jnp.float32) + b3_ref[...]
    h = jnp.maximum(h, 0.0).astype(jnp.bfloat16)
    # Layer 4: Linear(128, C_out_p)
    out = jnp.dot(h, w4_ref[...], preferred_element_type=jnp.float32) + b4_ref[...]
    o_ref[...] = out.astype(o_ref.dtype)


def _round_up(x, m):
    return (x + m - 1) // m * m


def prepare_params(params):
    """One-time parameter prep (do this ONCE and reuse across forward calls):
    cast weights to bf16 and zero-pad the layer-4 output dim to a multiple of
    128 lanes so the kernel's output stores are lane-dense."""
    LANE = 128
    c_out = params["w4"].shape[1]
    c_out_p = _round_up(c_out, LANE)
    w4p = jnp.zeros((params["w4"].shape[0], c_out_p), jnp.bfloat16)
    w4p = w4p.at[:, :c_out].set(params["w4"].astype(jnp.bfloat16))
    b4p = jnp.zeros((1, c_out_p), jnp.float32).at[:, :c_out].set(params["b4"])
    prep = {
        "w1": params["w1"].astype(jnp.bfloat16), "b1": params["b1"],
        "w2": params["w2"].astype(jnp.bfloat16), "b2": params["b2"],
        "w3": params["w3"].astype(jnp.bfloat16), "b3": params["b3"],
        "w4": w4p, "b4": b4p,
    }
    return prep, c_out


def msci_model_forward(x, prep, c_out, *, tile_b=None):
    """x: (B, C_in) float32. prep: output of prepare_params. c_out: python int."""
    B, C_in = x.shape
    w1, b1 = prep["w1"], prep["b1"]
    w2, b2 = prep["w2"], prep["b2"]
    w3, b3 = prep["w3"], prep["b3"]
    w4, b4 = prep["w4"], prep["b4"]
    H1, H2, H3 = w1.shape[1], w2.shape[1], w3.shape[1]   # 512, 256, 128
    C_out_p = w4.shape[1]

    # Batch-tile heuristic:
    #  * large tiles (up to 512) amortize per-step pipeline overhead,
    #  * keep grid >= 2 whenever B > 128 so both v7x TensorCores are engaged,
    #  * tiny batches use a single minimally padded tile.
    if tile_b is None:
        if B >= 1024:
            tile_b = 512
        elif B > 256:
            tile_b = min(512, _round_up(pl.cdiv(B, 2), 128))
        elif B > 128:
            tile_b = 128
        else:
            tile_b = _round_up(max(B, 8), 8)
    B_p = _round_up(B, tile_b)

    # Pad batch rows only when needed (no unconditional pad copy).
    if B_p == B:
        x_in = x
    else:
        x_in = jnp.zeros((B_p, C_in), x.dtype).at[:B, :].set(x)

    grid = (B_p // tile_b,)

    def rep(shape):
        # weight / bias blocks: full array, same block for every grid step
        return pl.BlockSpec(shape, lambda i: (0, 0))

    flops = 2 * B_p * (C_in * H1 + H1 * H2 + H2 * H3 + H3 * C_out_p)
    bytes_accessed = (
        int(x_in.size) * x_in.dtype.itemsize
        + B_p * C_out_p * 4
        + sum(int(a.size) * a.dtype.itemsize
              for a in (w1, b1, w2, b2, w3, b3, w4, b4)))

    out = pl.pallas_call(
        mlp_kernel,
        out_shape=jax.ShapeDtypeStruct((B_p, C_out_p), jnp.float32),
        grid_spec=pltpu.PrefetchScalarGridSpec(
            num_scalar_prefetch=0,
            grid=grid,
            in_specs=[
                pl.BlockSpec((tile_b, C_in), lambda i: (i, 0)),   # x tile (unpadded lanes)
                rep(w1.shape), rep(b1.shape),
                rep(w2.shape), rep(b2.shape),
                rep(w3.shape), rep(b3.shape),
                rep(w4.shape), rep(b4.shape),
            ],
            out_specs=pl.BlockSpec((tile_b, C_out_p), lambda i: (i, 0)),
        ),
        compiler_params=pltpu.CompilerParams(
            dimension_semantics=("parallel",),
            vmem_limit_bytes=32 * 1024 * 1024,
        ),
        cost_estimate=pl.CostEstimate(
            flops=flops, transcendentals=0, bytes_accessed=bytes_accessed),
    )(x_in, w1, b1, w2, b2, w3, b3, w4, b4)

    return out[:B, :c_out]


def init_params(key, input_channel, output_channel):
    """Deterministic init mimicking PyTorch nn.Linear default (uniform +-1/sqrt(fan_in)).
    Weights stored transposed: (in_features, out_features)."""
    dims = [(input_channel, 512), (512, 256), (256, 128), (128, output_channel)]
    params = {}
    for idx, (fan_in, fan_out) in enumerate(dims, start=1):
        key, kw, kb = jax.random.split(key, 3)
        bound = 1.0 / (fan_in ** 0.5)
        params[f"w{idx}"] = jax.random.uniform(
            kw, (fan_in, fan_out), jnp.float32, minval=-bound, maxval=bound)
        params[f"b{idx}"] = jax.random.uniform(
            kb, (1, fan_out), jnp.float32, minval=-bound, maxval=bound)
    return params


def reference_forward(x, params):
    h = jnp.maximum(x @ params["w1"] + params["b1"], 0.0)
    h = jnp.maximum(h @ params["w2"] + params["b2"], 0.0)
    h = jnp.maximum(h @ params["w3"] + params["b3"], 0.0)
    return h @ params["w4"] + params["b4"]


if __name__ == "__main__":
    key = jax.random.PRNGKey(0)
    B, C_IN, C_OUT = 256, 32, 16

    key, kx = jax.random.split(key)
    x = jax.random.normal(kx, (B, C_IN), jnp.float32)
    params = init_params(key, C_IN, C_OUT)

    # One-time parameter preparation, outside the hot path.
    prep, c_out = prepare_params(params)

    fwd = jax.jit(lambda xb: msci_model_forward(xb, prep, c_out))
    out = jax.block_until_ready(fwd(x))

    ref = reference_forward(x, params)
    assert out.shape == (B, C_OUT)
    # bf16 matmul operands with f32 accumulation -> loosened tolerance.
    assert jnp.allclose(out, ref, atol=3e-2, rtol=3e-2), \
        float(jnp.max(jnp.abs(out - ref)))
    print("KERNEL_OK")
</pallas_src>

<mosaic_0001>
module attributes {stable_mosaic.version = 11 : i64} {
  func.func @mlp_kernel(%arg0: i32, %arg1: memref<128x32xf32, #tpu.memory_space<vmem>>, %arg2: memref<32x512xbf16, #tpu.memory_space<vmem>>, %arg3: memref<1x512xf32, #tpu.memory_space<vmem>>, %arg4: memref<512x256xbf16, #tpu.memory_space<vmem>>, %arg5: memref<1x256xf32, #tpu.memory_space<vmem>>, %arg6: memref<256x128xbf16, #tpu.memory_space<vmem>>, %arg7: memref<1x128xf32, #tpu.memory_space<vmem>>, %arg8: memref<128x128xbf16, #tpu.memory_space<vmem>>, %arg9: memref<1x128xf32, #tpu.memory_space<vmem>>, %arg10: memref<128x128xf32, #tpu.memory_space<vmem>>) attributes {dimension_semantics = [#tpu.dimension_semantics<parallel>], iteration_bounds = array<i64: 2>, scalar_prefetch = 0 : i64, scratch_operands = 0 : i64, tpu.core_type = #tpu.core_type<tc>, window_params = [{transform_indices = @transform_0, window_bounds = array<i64: 128, 32>}, {pipeline_mode = #tpu.pipeline_mode<synchronous>, transform_indices = @transform_1, window_bounds = array<i64: 32, 512>}, {pipeline_mode = #tpu.pipeline_mode<synchronous>, transform_indices = @transform_2, window_bounds = array<i64: 1, 512>}, {pipeline_mode = #tpu.pipeline_mode<synchronous>, transform_indices = @transform_3, window_bounds = array<i64: 512, 256>}, {pipeline_mode = #tpu.pipeline_mode<synchronous>, transform_indices = @transform_4, window_bounds = array<i64: 1, 256>}, {pipeline_mode = #tpu.pipeline_mode<synchronous>, transform_indices = @transform_5, window_bounds = array<i64: 256, 128>}, {pipeline_mode = #tpu.pipeline_mode<synchronous>, transform_indices = @transform_6, window_bounds = array<i64: 1, 128>}, {pipeline_mode = #tpu.pipeline_mode<synchronous>, transform_indices = @transform_7, window_bounds = array<i64: 128, 128>}, {pipeline_mode = #tpu.pipeline_mode<synchronous>, transform_indices = @transform_8, window_bounds = array<i64: 1, 128>}, {transform_indices = @transform_9, window_bounds = array<i64: 128, 128>}]} {
    %c0 = arith.constant 0 : index
    %c0_0 = arith.constant 0 : index
    %0 = vector.load %arg1[%c0, %c0_0] : memref<128x32xf32, #tpu.memory_space<vmem>>, vector<128x32xf32>
    %1 = arith.truncf %0 : vector<128x32xf32> to vector<128x32xbf16>
    %c0_1 = arith.constant 0 : index
    %c0_2 = arith.constant 0 : index
    %2 = vector.load %arg2[%c0_1, %c0_2] : memref<32x512xbf16, #tpu.memory_space<vmem>>, vector<32x512xbf16>
    %cst = arith.constant dense<0.000000e+00> : vector<128x512xf32>
    %3 = tpu.matmul %1, %2, %cst {dimension_numbers = #tpu.dot_dimension_numbers<[1], [0], [0], [1], [0, 0, 1, 1], [], []>} : vector<128x32xbf16>, vector<32x512xbf16>, vector<128x512xf32> -> vector<128x512xf32>
    %c0_3 = arith.constant 0 : index
    %c0_4 = arith.constant 0 : index
    %4 = vector.load %arg3[%c0_3, %c0_4] : memref<1x512xf32, #tpu.memory_space<vmem>>, vector<1x512xf32>
    %5 = vector.broadcast %4 : vector<1x512xf32> to vector<128x512xf32>
    %6 = arith.addf %3, %5 : vector<128x512xf32>
    %cst_5 = arith.constant 0.000000e+00 : f32
    %7 = vector.broadcast %cst_5 : f32 to vector<128x512xf32>
    %8 = arith.maximumf %6, %7 : vector<128x512xf32>
    %9 = arith.truncf %8 : vector<128x512xf32> to vector<128x512xbf16>
    %c0_6 = arith.constant 0 : index
    %c0_7 = arith.constant 0 : index
    %10 = vector.load %arg4[%c0_6, %c0_7] : memref<512x256xbf16, #tpu.memory_space<vmem>>, vector<512x256xbf16>
    %cst_8 = arith.constant dense<0.000000e+00> : vector<128x256xf32>
    %11 = tpu.matmul %9, %10, %cst_8 {dimension_numbers = #tpu.dot_dimension_numbers<[1], [0], [0], [1], [0, 0, 1, 1], [], []>} : vector<128x512xbf16>, vector<512x256xbf16>, vector<128x256xf32> -> vector<128x256xf32>
    %c0_9 = arith.constant 0 : index
    %c0_10 = arith.constant 0 : index
    %12 = vector.load %arg5[%c0_9, %c0_10] : memref<1x256xf32, #tpu.memory_space<vmem>>, vector<1x256xf32>
    %13 = vector.broadcast %12 : vector<1x256xf32> to vector<128x256xf32>
    %14 = arith.addf %11, %13 : vector<128x256xf32>
    %cst_11 = arith.constant 0.000000e+00 : f32
    %15 = vector.broadcast %cst_11 : f32 to vector<128x256xf32>
    %16 = arith.maximumf %14, %15 : vector<128x256xf32>
    %17 = arith.truncf %16 : vector<128x256xf32> to vector<128x256xbf16>
    %c0_12 = arith.constant 0 : index
    %c0_13 = arith.constant 0 : index
    %18 = vector.load %arg6[%c0_12, %c0_13] : memref<256x128xbf16, #tpu.memory_space<vmem>>, vector<256x128xbf16>
    %cst_14 = arith.constant dense<0.000000e+00> : vector<128x128xf32>
    %19 = tpu.matmul %17, %18, %cst_14 {dimension_numbers = #tpu.dot_dimension_numbers<[1], [0], [0], [1], [0, 0, 1, 1], [], []>} : vector<128x256xbf16>, vector<256x128xbf16>, vector<128x128xf32> -> vector<128x128xf32>
    %c0_15 = arith.constant 0 : index
    %c0_16 = arith.constant 0 : index
    %20 = vector.load %arg7[%c0_15, %c0_16] : memref<1x128xf32, #tpu.memory_space<vmem>>, vector<1x128xf32>
    %21 = vector.broadcast %20 : vector<1x128xf32> to vector<128x128xf32>
    %22 = arith.addf %19, %21 : vector<128x128xf32>
    %cst_17 = arith.constant 0.000000e+00 : f32
    %23 = vector.broadcast %cst_17 : f32 to vector<128x128xf32>
    %24 = arith.maximumf %22, %23 : vector<128x128xf32>
    %25 = arith.truncf %24 : vector<128x128xf32> to vector<128x128xbf16>
    %c0_18 = arith.constant 0 : index
    %c0_19 = arith.constant 0 : index
    %26 = vector.load %arg8[%c0_18, %c0_19] : memref<128x128xbf16, #tpu.memory_space<vmem>>, vector<128x128xbf16>
    %cst_20 = arith.constant dense<0.000000e+00> : vector<128x128xf32>
    %27 = tpu.matmul %25, %26, %cst_20 {dimension_numbers = #tpu.dot_dimension_numbers<[1], [0], [0], [1], [0, 0, 1, 1], [], []>} : vector<128x128xbf16>, vector<128x128xbf16>, vector<128x128xf32> -> vector<128x128xf32>
    %c0_21 = arith.constant 0 : index
    %c0_22 = arith.constant 0 : index
    %28 = vector.load %arg9[%c0_21, %c0_22] : memref<1x128xf32, #tpu.memory_space<vmem>>, vector<1x128xf32>
    %29 = vector.broadcast %28 : vector<1x128xf32> to vector<128x128xf32>
    %30 = arith.addf %27, %29 : vector<128x128xf32>
    %c0_23 = arith.constant 0 : index
    %c0_24 = arith.constant 0 : index
    %31 = vector.load %arg10[%c0_23, %c0_24] : memref<128x128xf32, #tpu.memory_space<vmem>>, vector<128x128xf32>
    tpu.vector_store %arg10[%c0_23, %c0_24], %30 {strides = array<i32>} : memref<128x128xf32, #tpu.memory_space<vmem>>, vector<128x128xf32>,
    return
  }
  func.func @transform_0(%arg0: i32) -> (i32, i32) {
    %c0_i32 = arith.constant 0 : i32
    %c0_i32_0 = arith.constant 0 : i32
    return %arg0, %c0_i32 : i32, i32
  }
  func.func @transform_1(%arg0: i32) -> (i32, i32) {
    %c0_i32 = arith.constant 0 : i32
    %c0_i32_0 = arith.constant 0 : i32
    %c0_i32_1 = arith.constant 0 : i32
    return %c0_i32, %c0_i32_0 : i32, i32
  }
  func.func @transform_2(%arg0: i32) -> (i32, i32) {
    %c0_i32 = arith.constant 0 : i32
    %c0_i32_0 = arith.constant 0 : i32
    %c0_i32_1 = arith.constant 0 : i32
    return %c0_i32, %c0_i32_0 : i32, i32
  }
  func.func @transform_3(%arg0: i32) -> (i32, i32) {
    %c0_i32 = arith.constant 0 : i32
    %c0_i32_0 = arith.constant 0 : i32
    %c0_i32_1 = arith.constant 0 : i32
    return %c0_i32, %c0_i32_0 : i32, i32
  }
  func.func @transform_4(%arg0: i32) -> (i32, i32) {
    %c0_i32 = arith.constant 0 : i32
    %c0_i32_0 = arith.constant 0 : i32
    %c0_i32_1 = arith.constant 0 : i32
    return %c0_i32, %c0_i32_0 : i32, i32
  }
  func.func @transform_5(%arg0: i32) -> (i32, i32) {
    %c0_i32 = arith.constant 0 : i32
    %c0_i32_0 = arith.constant 0 : i32
    %c0_i32_1 = arith.constant 0 : i32
    return %c0_i32, %c0_i32_0 : i32, i32
  }
  func.func @transform_6(%arg0: i32) -> (i32, i32) {
    %c0_i32 = arith.constant 0 : i32
    %c0_i32_0 = arith.constant 0 : i32
    %c0_i32_1 = arith.constant 0 : i32
    return %c0_i32, %c0_i32_0 : i32, i32
  }
  func.func @transform_7(%arg0: i32) -> (i32, i32) {
    %c0_i32 = arith.constant 0 : i32
    %c0_i32_0 = arith.constant 0 : i32
    %c0_i32_1 = arith.constant 0 : i32
    return %c0_i32, %c0_i32_0 : i32, i32
  }
  func.func @transform_8(%arg0: i32) -> (i32, i32) {
    %c0_i32 = arith.constant 0 : i32
    %c0_i32_0 = arith.constant 0 : i32
    %c0_i32_1 = arith.constant 0 : i32
    return %c0_i32, %c0_i32_0 : i32, i32
  }
  func.func @transform_9(%arg0: i32) -> (i32, i32) {
    %c0_i32 = arith.constant 0 : i32
    %c0_i32_0 = arith.constant 0 : i32
    return %arg0, %c0_i32 : i32, i32
  }
}

</mosaic_0001>

<llo_original>
// kernel: _lambda_.1
$region0: #{_lambda_.1}
  #allocation0 [shape = 'u32[]', space=smem, size = 0x4, offset = 0x4, fixed_abs, tag = 'smem constant byte address 0x4 - core index']
  #allocation1 [shape = 'u32[144,128]{1,0:T(1,128)}', space=vmem, size = 0x12000, scoped, tag = 'internal scratch']
  %s0 = inlined_call_operand.vmem [shape: f32[256,32], index: 0, kind: input, shape index: {}]
  %s1 = inlined_call_operand.vmem [shape: bf16[32,512], index: 1, kind: input, shape index: {}]
  %s2 = inlined_call_operand.vmem [shape: f32[1,512], index: 2, kind: input, shape index: {}]
  %s3 = inlined_call_operand.vmem [shape: bf16[512,256], index: 3, kind: input, shape index: {}]
  %s4 = inlined_call_operand.vmem [shape: f32[1,256], index: 4, kind: input, shape index: {}]
  %s5 = inlined_call_operand.vmem [shape: bf16[256,128], index: 5, kind: input, shape index: {}]
  %s6 = inlined_call_operand.vmem [shape: f32[1,128], index: 6, kind: input, shape index: {}]
  %s7 = inlined_call_operand.vmem [shape: bf16[128,128], index: 7, kind: input, shape index: {}]
  %s8 = inlined_call_operand.vmem [shape: f32[1,128], index: 8, kind: input, shape index: {}]
  %s9 = inlined_call_operand.vmem [shape: f32[256,128], index: 9, kind: output, shape index: {}]
  %s10 = sld [smem:[#allocation0]]
  $region69: #{_lambda_.1} parent=0
    _
  %s12 = ssub.s32 1, %s10
  %s13 = scalar_select 0, %s12, %s10
  loop: start=0, step=1, limit=4
  $region2: #{_lambda_.1} parent=0 // loop_pre_header
    _
  $region3: #{_lambda_.1} parent=0 // loop_header
    %s15 = sphi 0, %s19
    %p16 = scmp.ge.s32.totalorder %s15, 4
    %s25 = sphi 0, %s27
    %s28 = sphi 0, %s25
    %s29 = sphi 0, %s28
    %s45 = sphi 0, %s29
    %s49 = sphi 0, %s49
    %s51 = sphi 0, %s49
    %s52 = sphi 0, %s51
    %s66 = sphi 0, %s52
    %s70 = sphi 0, %s70
    %s72 = sphi 0, %s70
    %s73 = sphi 0, %s72
    %s87 = sphi 0, %s73
    %s91 = sphi 0, %s91
    %s93 = sphi 0, %s91
    %s94 = sphi 0, %s93
    %s108 = sphi 0, %s94
    %s112 = sphi 0, %s112
    %s114 = sphi 0, %s112
    %s115 = sphi 0, %s114
    %s129 = sphi 0, %s115
    %s133 = sphi 0, %s133
    %s135 = sphi 0, %s133
    %s136 = sphi 0, %s135
    %s150 = sphi 0, %s136
    %s154 = sphi 0, %s154
    %s156 = sphi 0, %s154
    %s157 = sphi 0, %s156
    %s171 = sphi 0, %s157
    %s175 = sphi 0, %s175
    %s177 = sphi 0, %s175
    %s178 = sphi 0, %s177
    %s192 = sphi 0, %s178
    %s196 = sphi 0, %s196
    %s198 = sphi 0, %s196
    %s199 = sphi 0, %s198
    %s213 = sphi 0, %s199
    %s219 = sphi 0, %s221
    %s222 = sphi 0, %s219
    %s223 = sphi 0, %s222
    %s239 = sphi 0, %s223
  $region4: #{_lambda_.1} parent=0 // loop_header_branch
    %18 = sbr.rel (%p16) target = $region8
  $region5: #{_lambda_.1} parent=0 // loop_body
    %s20 = ssub.s32 %s15, 1
    %s21 = ssub.s32 %s15, 2
    %s22 = sadd.s32 %s15, 1
    %s23 = ssub.s32 %s15, %s22
    %p24 = scmp.eq.s32.totalorder %s23, 0
    %s26 = sadd.s32 %s25, 1
    %s27 = scalar_select %p24, %s25, %s26
    %p30 = pneg %p24
    %p31 = scmp.eq.s32.totalorder %s15, 1
    %p32 = por %p30, %p31
    %p33 = scmp.ne.s32.totalorder %s25, %s28
    %p34 = scmp.eq.s32.totalorder %s15, 0
    %p35 = por %p33, %p34
    %p36 = scmp.ne.s32.totalorder %s25, %s28
    %p37 = scmp.eq.s32.totalorder %s20, 1
    %p38 = por %p36, %p37
    %p39 = scmp.ne.s32.totalorder %s28, %s29
    %p40 = scmp.eq.s32.totalorder %s20, 0
    %p41 = por %p39, %p40
    %p42 = scmp.ne.s32.totalorder %s28, %s29
    %p43 = scmp.eq.s32.totalorder %s21, 1
    %p44 = por %p42, %p43
    %p46 = scmp.ne.s32.totalorder %s29, %s45
    %p47 = scmp.eq.s32.totalorder %s21, 0
    %p48 = por %p46, %p47
    %s50 = sadd.s32 %s49, 1
    %p53 = scmp.eq.s32.totalorder %s15, 1
    %p54 = scmp.ne.s32.totalorder %s49, %s51
    %p55 = scmp.eq.s32.totalorder %s15, 0
    %p56 = por %p54, %p55
    %p57 = scmp.ne.s32.totalorder %s49, %s51
    %p58 = scmp.eq.s32.totalorder %s20, 1
    %p59 = por %p57, %p58
    %p60 = scmp.ne.s32.totalorder %s51, %s52
    %p61 = scmp.eq.s32.totalorder %s20, 0
    %p62 = por %p60, %p61
    %p63 = scmp.ne.s32.totalorder %s51, %s52
    %p64 = scmp.eq.s32.totalorder %s21, 1
    %p65 = por %p63, %p64
    %p67 = scmp.ne.s32.totalorder %s52, %s66
    %p68 = scmp.eq.s32.totalorder %s21, 0
    %p69 = por %p67, %p68
    %s71 = sadd.s32 %s70, 1
    %p74 = scmp.eq.s32.totalorder %s15, 1
    %p75 = scmp.ne.s32.totalorder %s70, %s72
    %p76 = scmp.eq.s32.totalorder %s15, 0
    %p77 = por %p75, %p76
    %p78 = scmp.ne.s32.totalorder %s70, %s72
    %p79 = scmp.eq.s32.totalorder %s20, 1
    %p80 = por %p78, %p79
    %p81 = scmp.ne.s32.totalorder %s72, %s73
    %p82 = scmp.eq.s32.totalorder %s20, 0
    %p83 = por %p81, %p82
    %p84 = scmp.ne.s32.totalorder %s72, %s73
    %p85 = scmp.eq.s32.totalorder %s21, 1
    %p86 = por %p84, %p85
    %p88 = scmp.ne.s32.totalorder %s73, %s87
    %p89 = scmp.eq.s32.totalorder %s21, 0
    %p90 = por %p88, %p89
    %s92 = sadd.s32 %s91, 1
    %p95 = scmp.eq.s32.totalorder %s15, 1
    %p96 = scmp.ne.s32.totalorder %s91, %s93
    %p97 = scmp.eq.s32.totalorder %s15, 0
    %p98 = por %p96, %p97
    %p99 = scmp.ne.s32.totalorder %s91, %s93
    %p100 = scmp.eq.s32.totalorder %s20, 1
    %p101 = por %p99, %p100
    %p102 = scmp.ne.s32.totalorder %s93, %s94
    %p103 = scmp.eq.s32.totalorder %s20, 0
    %p104 = por %p102, %p103
    %p105 = scmp.ne.s32.totalorder %s93, %s94
    %p106 = scmp.eq.s32.totalorder %s21, 1
    %p107 = por %p105, %p106
    %p109 = scmp.ne.s32.totalorder %s94, %s108
    %p110 = scmp.eq.s32.totalorder %s21, 0
    %p111 = por %p109, %p110
    %s113 = sadd.s32 %s112, 1
    %p116 = scmp.eq.s32.totalorder %s15, 1
    %p117 = scmp.ne.s32.totalorder %s112, %s114
    %p118 = scmp.eq.s32.totalorder %s15, 0
    %p119 = por %p117, %p118
    %p120 = scmp.ne.s32.totalorder %s112, %s114
    %p121 = scmp.eq.s32.totalorder %s20, 1
    %p122 = por %p120, %p121
    %p123 = scmp.ne.s32.totalorder %s114, %s115
    %p124 = scmp.eq.s32.totalorder %s20, 0
    %p125 = por %p123, %p124
    %p126 = scmp.ne.s32.totalorder %s114, %s115
    %p127 = scmp.eq.s32.totalorder %s21, 1
    %p128 = por %p126, %p127
    %p130 = scmp.ne.s32.totalorder %s115, %s129
    %p131 = scmp.eq.s32.totalorder %s21, 0
    %p132 = por %p130, %p131
    %s134 = sadd.s32 %s133, 1
    %p137 = scmp.eq.s32.totalorder %s15, 1
    %p138 = scmp.ne.s32.totalorder %s133, %s135
    %p139 = scmp.eq.s32.totalorder %s15, 0
    %p140 = por %p138, %p139
    %p141 = scmp.ne.s32.totalorder %s133, %s135
    %p142 = scmp.eq.s32.totalorder %s20, 1
    %p143 = por %p141, %p142
    %p144 = scmp.ne.s32.totalorder %s135, %s136
    %p145 = scmp.eq.s32.totalorder %s20, 0
    %p146 = por %p144, %p145
    %p147 = scmp.ne.s32.totalorder %s135, %s136
    %p148 = scmp.eq.s32.totalorder %s21, 1
    %p149 = por %p147, %p148
    %p151 = scmp.ne.s32.totalorder %s136, %s150
    %p152 = scmp.eq.s32.totalorder %s21, 0
    %p153 = por %p151, %p152
    %s155 = sadd.s32 %s154, 1
    %p158 = scmp.eq.s32.totalorder %s15, 1
    %p159 = scmp.ne.s32.totalorder %s154, %s156
    %p160 = scmp.eq.s32.totalorder %s15, 0
    %p161 = por %p159, %p160
    %p162 = scmp.ne.s32.totalorder %s154, %s156
    %p163 = scmp.eq.s32.totalorder %s20, 1
    %p164 = por %p162, %p163
    %p165 = scmp.ne.s32.totalorder %s156, %s157
    %p166 = scmp.eq.s32.totalorder %s20, 0
    %p167 = por %p165, %p166
    %p168 = scmp.ne.s32.totalorder %s156, %s157
    %p169 = scmp.eq.s32.totalorder %s21, 1
    %p170 = por %p168, %p169
    %p172 = scmp.ne.s32.totalorder %s157, %s171
    %p173 = scmp.eq.s32.totalorder %s21, 0
    %p174 = por %p172, %p173
    %s176 = sadd.s32 %s175, 1
    %p179 = scmp.eq.s32.totalorder %s15, 1
    %p180 = scmp.ne.s32.totalorder %s175, %s177
    %p181 = scmp.eq.s32.totalorder %s15, 0
    %p182 = por %p180, %p181
    %p183 = scmp.ne.s32.totalorder %s175, %s177
    %p184 = scmp.eq.s32.totalorder %s20, 1
    %p185 = por %p183, %p184
    %p186 = scmp.ne.s32.totalorder %s177, %s178
    %p187 = scmp.eq.s32.totalorder %s20, 0
    %p188 = por %p186, %p187
    %p189 = scmp.ne.s32.totalorder %s177, %s178
    %p190 = scmp.eq.s32.totalorder %s21, 1
    %p191 = por %p189, %p190
    %p193 = scmp.ne.s32.totalorder %s178, %s192
    %p194 = scmp.eq.s32.totalorder %s21, 0
    %p195 = por %p193, %p194
    %s197 = sadd.s32 %s196, 1
    %p200 = scmp.eq.s32.totalorder %s15, 1
    %p201 = scmp.ne.s32.totalorder %s196, %s198
    %p202 = scmp.eq.s32.totalorder %s15, 0
    %p203 = por %p201, %p202
    %p204 = scmp.ne.s32.totalorder %s196, %s198
    %p205 = scmp.eq.s32.totalorder %s20, 1
    %p206 = por %p204, %p205
    %p207 = scmp.ne.s32.totalorder %s198, %s199
    %p208 = scmp.eq.s32.totalorder %s20, 0
    %p209 = por %p207, %p208
    %p210 = scmp.ne.s32.totalorder %s198, %s199
    %p211 = scmp.eq.s32.totalorder %s21, 1
    %p212 = por %p210, %p211
    %p214 = scmp.ne.s32.totalorder %s199, %s213
    %p215 = scmp.eq.s32.totalorder %s21, 0
    %p216 = por %p214, %p215
    %s217 = ssub.s32 %s15, %s22
    %p218 = scmp.eq.s32.totalorder %s217, 0
    %s220 = sadd.s32 %s219, 1
    %s221 = scalar_select %p218, %s219, %s220
    %p224 = pneg %p218
    %p225 = scmp.eq.s32.totalorder %s15, 1
    %p226 = por %p224, %p225
    %p227 = scmp.ne.s32.totalorder %s219, %s222
    %p228 = scmp.eq.s32.totalorder %s15, 0
    %p229 = por %p227, %p228
    %p230 = scmp.ne.s32.totalorder %s219, %s222
    %p231 = scmp.eq.s32.totalorder %s20, 1
    %p232 = por %p230, %p231
    %p233 = scmp.ne.s32.totalorder %s222, %s223
    %p234 = scmp.eq.s32.totalorder %s20, 0
    %p235 = por %p233, %p234
    %p236 = scmp.ne.s32.totalorder %s222, %s223
    %p237 = scmp.eq.s32.totalorder %s21, 1
    %p238 = por %p236, %p237
    %p240 = scmp.ne.s32.totalorder %s223, %s239
    %p241 = scmp.eq.s32.totalorder %s21, 0
    %p242 = por %p240, %p241
    %p243 = scmp.le.s32.totalorder 1, %s15
    %p244 = scmp.lt.s32.totalorder %s15, 3
    %p245 = pnand %p243, %p244
    %p246 = pneg %p245
    // Predicated region
    $region9: #{_lambda_.1} parent=5 // pred_check
      _
    $region10: #{_lambda_.1} parent=5 // pred_check_branch
      %248 = sbr.rel (%p245) target = $region12
    $region11: #{_lambda_.1} parent=5 // pred_region
      %s249 = ssub.s32 %s15, 1
      // Predicated region
      $region13: #{_lambda_.1} parent=11 // pred_check
        %p250 = pneg %p62
      $region14: #{_lambda_.1} parent=11 // pred_check_branch
        %252 = sbr.rel (%p250) target = $region16
      $region15: #{_lambda_.1} parent=11 // pred_region
        _
      $region16: #{_lambda_.1} parent=11 // pred_fallthru
        _
      // Predicated region
      $region17: #{_lambda_.1} parent=11 // pred_check
        %p253 = pneg %p83
      $region18: #{_lambda_.1} parent=11 // pred_check_branch
        %255 = sbr.rel (%p253) target = $region20
      $region19: #{_lambda_.1} parent=11 // pred_region
        _
      $region20: #{_lambda_.1} parent=11 // pred_fallthru
        _
      // Predicated region
      $region21: #{_lambda_.1} parent=11 // pred_check
        %p256 = pneg %p104
      $region22: #{_lambda_.1} parent=11 // pred_check_branch
        %258 = sbr.rel (%p256) target = $region24
      $region23: #{_lambda_.1} parent=11 // pred_region
        _
      $region24: #{_lambda_.1} parent=11 // pred_fallthru
        _
      // Predicated region
      $region25: #{_lambda_.1} parent=11 // pred_check
        %p259 = pneg %p125
      $region26: #{_lambda_.1} parent=11 // pred_check_branch
        %261 = sbr.rel (%p259) target = $region28
      $region27: #{_lambda_.1} parent=11 // pred_region
        _
      $region28: #{_lambda_.1} parent=11 // pred_fallthru
        _
      // Predicated region
      $region29: #{_lambda_.1} parent=11 // pred_check
        %p262 = pneg %p146
      $region30: #{_lambda_.1} parent=11 // pred_check_branch
        %264 = sbr.rel (%p262) target = $region32
      $region31: #{_lambda_.1} parent=11 // pred_region
        _
      $region32: #{_lambda_.1} parent=11 // pred_fallthru
        _
      // Predicated region
      $region33: #{_lambda_.1} parent=11 // pred_check
        %p265 = pneg %p167
      $region34: #{_lambda_.1} parent=11 // pred_check_branch
        %267 = sbr.rel (%p265) target = $region36
      $region35: #{_lambda_.1} parent=11 // pred_region
        _
      $region36: #{_lambda_.1} parent=11 // pred_fallthru
        _
      // Predicated region
      $region37: #{_lambda_.1} parent=11 // pred_check
        %p268 = pneg %p188
      $region38: #{_lambda_.1} parent=11 // pred_check_branch
        %270 = sbr.rel (%p268) target = $region40
      $region39: #{_lambda_.1} parent=11 // pred_region
        _
      $region40: #{_lambda_.1} parent=11 // pred_fallthru
        _
      // Predicated region
      $region41: #{_lambda_.1} parent=11 // pred_check
        %p271 = pneg %p209
      $region42: #{_lambda_.1} parent=11 // pred_check_branch
        %273 = sbr.rel (%p271) target = $region44
      $region43: #{_lambda_.1} parent=11 // pred_region
        _
      $region44: #{_lambda_.1} parent=11 // pred_fallthru
        _
    $region12: #{_lambda_.1} parent=5 // pred_fallthru
      _
    %p274 = scmp.lt.s32.totalorder %s15, 2
    // Predicated region
    $region45: #{_lambda_.1} parent=5 // pred_check
      %p275 = pneg %p274
    $region46: #{_lambda_.1} parent=5 // pred_check_branch
      %277 = sbr.rel (%p275) target = $region48
    $region47: #{_lambda_.1} parent=5 // pred_region
      // Predicated region
      $region49: #{_lambda_.1} parent=47 // pred_check
        %p278 = pneg %p35
      $region50: #{_lambda_.1} parent=47 // pred_check_branch
        %280 = sbr.rel (%p278) target = $region52
      $region51: #{_lambda_.1} parent=47 // pred_region
        %s281 = smul.u32 16, %s15
        %p282 = scmp.lt.s32.totalorder %s281, 31
        %s283 = scalar_select %p282, %s281, 31
        %s284 = smul.addr %s283, 8
        %s285 = scalar_lea.vmem %s0, %s284
        %s286 = smul.u32 16, %s15
      $region52: #{_lambda_.1} parent=47 // pred_fallthru
        _
    $region48: #{_lambda_.1} parent=5 // pred_fallthru
      _
    %p287 = scmp.le.s32.totalorder 1, %s15
    %p288 = scmp.lt.s32.totalorder %s15, 3
    %p289 = pnand %p287, %p288
    %p290 = pneg %p289
    // Predicated region
    $region53: #{_lambda_.1} parent=5 // pred_check
      _
    $region54: #{_lambda_.1} parent=5 // pred_check_branch
      %292 = sbr.rel (%p289) target = $region56
    $region55: #{_lambda_.1} parent=5 // pred_region
      %s293 = ssub.s32 %s15, 1
      %s294 = smul.u32 16, %s20
      %p295 = scmp.lt.s32.totalorder %s294, 31
      %s296 = scalar_select %p295, %s294, 31
      %s297 = smul.addr %s296, 8
      %s298 = scalar_lea.vmem %s0, %s297
      %p299 = pneg %p41
      %p300 = pneg %p38
      %p301 = pneg %p62
      %p302 = pneg %p59
      %p303 = pneg %p83
      %p304 = pneg %p80
      %p305 = pneg %p104
      %p306 = pneg %p101
      %p307 = pneg %p125
      %p308 = pneg %p122
      %p309 = pneg %p146
      %p310 = pneg %p143
      %p311 = pneg %p167
      %p312 = pneg %p164
      %p313 = pneg %p188
      %p314 = pneg %p185
      %p315 = pneg %p209
      %p316 = pneg %p206
      %p317 = pneg %p235
      %p318 = pneg %p232
      %s319 = smul.u32 16, %s20
      %p320 = scmp.lt.s32.totalorder %s319, 31
      %s321 = scalar_select %p320, %s319, 31
      %s322 = smul.addr %s321, 8
      %s323 = scalar_lea.vmem %s9, %s322
      %s324 = smul.u32 16, %s20
      %p325 = scmp.lt.s32.totalorder %s324, 31
      %s326 = scalar_select %p325, %s324, 31
      %s327 = smul.addr %s326, 8
      %s328 = scalar_lea.vmem %s0, %s327
      %s329 = smul.u32 16, %s20
      %s330 = smul.u32 16, %s20
      %p331 = scmp.lt.s32.totalorder %s330, 31
      %s332 = scalar_select %p331, %s330, 31
      %s333 = smul.addr %s332, 8
      %s334 = scalar_lea.vmem %s9, %s333
      %s335 = smul.u32 16, %s20
      %v337 = vld [vmem:[%s328] sm:$0xff]
      %v338 = vld [vmem:[%s328 + $0x8] sm:$0xff]
      %v339 = vld [vmem:[%s328 + $0x10] sm:$0xff]
      %v340 = vld [vmem:[%s328 + $0x18] sm:$0xff]
      %v341 = vld [vmem:[%s328 + $0x20] sm:$0xff]
      %v342 = vld [vmem:[%s328 + $0x28] sm:$0xff]
      %v343 = vld [vmem:[%s328 + $0x30] sm:$0xff]
      %v344 = vld [vmem:[%s328 + $0x38] sm:$0xff]
      %v345 = vld [vmem:[%s328 + $0x40] sm:$0xff]
      %v346 = vld [vmem:[%s328 + $0x48] sm:$0xff]
      %v347 = vld [vmem:[%s328 + $0x50] sm:$0xff]
      %v348 = vld [vmem:[%s328 + $0x58] sm:$0xff]
      %v349 = vld [vmem:[%s328 + $0x60] sm:$0xff]
      %v350 = vld [vmem:[%s328 + $0x68] sm:$0xff]
      %v351 = vld [vmem:[%s328 + $0x70] sm:$0xff]
      %v352 = vld [vmem:[%s328 + $0x78] sm:$0xff]
      %v353 = vpack.c.bf16 %v338, %v337
      %v354 = vpack.c.bf16 %v340, %v339
      %v355 = vpack.c.bf16 %v342, %v341
      %v356 = vpack.c.bf16 %v344, %v343
      %v357 = vpack.c.bf16 %v346, %v345
      %v358 = vpack.c.bf16 %v348, %v347
      %v359 = vpack.c.bf16 %v350, %v349
      %v360 = vpack.c.bf16 %v352, %v351
      %v361 = vld [vmem:[%s1] sm:$0xff]
      %v362 = vld [vmem:[%s1 + $0x8] sm:$0xff]
      %v363 = vld [vmem:[%s1 + $0x10] sm:$0xff]
      %v364 = vld [vmem:[%s1 + $0x18] sm:$0xff]
      %v365 = vld [vmem:[%s1 + $0x20] sm:$0xff]
      %v366 = vld [vmem:[%s1 + $0x28] sm:$0xff]
      %v367 = vld [vmem:[%s1 + $0x30] sm:$0xff]
      %v368 = vld [vmem:[%s1 + $0x38] sm:$0xff]
      %v369 = vld [vmem:[%s2] sm:$0xf]
      %v371 = vlaneseq
      %v372 = vshrl.u32 %v371, 7
      %v373 = vsub.s32 0, %v372
      %v374 = vrot.slane %v369, %v373
      %v375 = vlaneseq
      %v376 = vshrl.u32 %v375, 7
      %v377 = vsub.s32 1, %v376
      %v378 = vrot.slane %v369, %v377
      %v379 = vlaneseq
      %v380 = vshrl.u32 %v379, 7
      %v381 = vsub.s32 2, %v380
      %v382 = vrot.slane %v369, %v381
      %v383 = vlaneseq
      %v384 = vshrl.u32 %v383, 7
      %v385 = vsub.s32 3, %v384
      %v386 = vrot.slane %v369, %v385
      %v399 = vunpack.c.l.b16 %v361
      %v400 = vunpack.c.h.b16 %v361
      %v401 = vunpack.c.l.b16 %v362
      %v402 = vunpack.c.h.b16 %v362
      %v403 = vunpack.c.l.b16 %v363
      %v404 = vunpack.c.h.b16 %v363
      %v405 = vunpack.c.l.b16 %v364
      %v406 = vunpack.c.h.b16 %v364
      %v407 = vunpack.c.l.b16 %v365
      %v408 = vunpack.c.h.b16 %v365
      %v409 = vunpack.c.l.b16 %v366
      %v410 = vunpack.c.h.b16 %v366
      %v411 = vunpack.c.l.b16 %v367
      %v412 = vunpack.c.h.b16 %v367
      %v413 = vunpack.c.l.b16 %v368
      %v414 = vunpack.c.h.b16 %v368
      %v415 = vpack.c.b16 %v403, %v399
      %v416 = vpack.c.b16 %v404, %v400
      %v417 = vpack.c.b16 %v405, %v401
      %v418 = vpack.c.b16 %v406, %v402
      %v419 = vpack.c.b16 %v411, %v407
      %v420 = vpack.c.b16 %v412, %v408
      %v421 = vpack.c.b16 %v413, %v409
      %v422 = vpack.c.b16 %v414, %v410
      %vm431 = vcmask 261120
      %v433 = vsel %vm431, %v353, 0
      %v436 = vsel %vm431, %v354, 0
      %v439 = vsel %vm431, %v355, 0
      %v442 = vsel %vm431, %v356, 0
      %v445 = vsel %vm431, %v357, 0
      %v448 = vsel %vm431, %v358, 0
      %v451 = vsel %vm431, %v359, 0
      %v454 = vsel %vm431, %v360, 0
      %456 = vmatprep.subr.bf16.mxu0 %v416
      %457 = vmatpush1.bf16.msra.mxu0 %v415
      %458 = vmatprep.subr.bf16.mxu0 %v420
      %459 = vmatpush1.bf16.msra.mxu0 %v419
      %460 = vmatprep.subr.bf16.mxu0 0
      %461 = vmatpush1.bf16.msra.mxu0 0
      %462 = vmatprep.subr.bf16.mxu0 0
      %463 = vmatpush1.bf16.msra.mxu0 0
      %464 = vmatprep.subr.bf16.mxu0 0
      %465 = vmatpush1.bf16.msra.mxu0 0
      %466 = vmatprep.subr.bf16.mxu0 0
      %467 = vmatpush1.bf16.msra.mxu0 0
      %468 = vmatprep.subr.bf16.mxu0 0
      %469 = vmatpush1.bf16.msra.mxu0 0
      %470 = vmatprep.subr.bf16.mxu0 0
      %471 = vmatpush1.bf16.msra.mxu0 0
      %472 = vmatprep.subr.bf16.mxu0 0
      %473 = vmatpush1.bf16.msra.mxu0 0
      %474 = vmatprep.subr.bf16.mxu0 0
      %475 = vmatpush1.bf16.msra.mxu0 0
      %476 = vmatprep.subr.bf16.mxu0 0
      %477 = vmatpush1.bf16.msra.mxu0 0
      %478 = vmatprep.subr.bf16.mxu0 0
      %479 = vmatpush1.bf16.msra.mxu0 0
      %480 = vmatprep.subr.bf16.mxu0 0
      %481 = vmatpush1.bf16.msra.mxu0 0
      %482 = vmatprep.subr.bf16.mxu0 0
      %483 = vmatpush1.bf16.msra.mxu0 0
      %484 = vmatprep.subr.bf16.mxu0 0
      %485 = vmatpush1.bf16.msra.mxu0 0
      %486 = vmatprep.subr.bf16.mxu0 0
      %487 = vmatpush1.bf16.msra.mxu0 0
      %488 = vmatprep.mubr.bf16.mxu0 0
      %489 = vmatmul.mubr.bf16.gmra.mrb[0].mxu0 %v433
      %v490 = vpop.f32.mrb[0].mxu0
      %v491 = vadd.f32 %v374, %v490
      %v492 = vpop.f32.mrb[0].mxu0
      %v493 = vadd.f32 %v378, %v492
      %v494 = vpop.f32.mrb[0].mxu0
      %v495 = vadd.f32 %v374, %v494
      %v496 = vpop.f32.mrb[0].mxu0
      %v497 = vadd.f32 %v378, %v496
      %498 = vmatprep.mubr.bf16.mxu0 0
      %499 = vmatmul.mubr.bf16.gmra.mrb[0].mxu0 %v436
      %v500 = vpop.f32.mrb[0].mxu0
      %v501 = vadd.f32 %v374, %v500
      %v502 = vpop.f32.mrb[0].mxu0
      %v503 = vadd.f32 %v378, %v502
      %v504 = vpop.f32.mrb[0].mxu0
      %v505 = vadd.f32 %v374, %v504
      %v506 = vpop.f32.mrb[0].mxu0
      %v507 = vadd.f32 %v378, %v506
      %508 = vmatprep.mubr.bf16.mxu0 0
      %509 = vmatmul.mubr.bf16.gmra.mrb[0].mxu0 %v439
      %v510 = vpop.f32.mrb[0].mxu0
      %v511 = vadd.f32 %v374, %v510
      %v512 = vpop.f32.mrb[0].mxu0
      %v513 = vadd.f32 %v378, %v512
      %v514 = vpop.f32.mrb[0].mxu0
      %v515 = vadd.f32 %v374, %v514
      %v516 = vpop.f32.mrb[0].mxu0
      %v517 = vadd.f32 %v378, %v516
      %518 = vmatprep.mubr.bf16.mxu0 0
      %519 = vmatmul.mubr.bf16.gmra.mrb[0].mxu0 %v442
      %v520 = vpop.f32.mrb[0].mxu0
      %v521 = vadd.f32 %v374, %v520
      %v522 = vpop.f32.mrb[0].mxu0
      %v523 = vadd.f32 %v378, %v522
      %v524 = vpop.f32.mrb[0].mxu0
      %v525 = vadd.f32 %v374, %v524
      %v526 = vpop.f32.mrb[0].mxu0
      %v527 = vadd.f32 %v378, %v526
      %528 = vmatprep.mubr.bf16.mxu0 0
      %529 = vmatmul.mubr.bf16.gmra.mrb[0].mxu0 %v445
      %v530 = vpop.f32.mrb[0].mxu0
      %v531 = vadd.f32 %v374, %v530
      %v532 = vpop.f32.mrb[0].mxu0
      %v533 = vadd.f32 %v378, %v532
      %v534 = vpop.f32.mrb[0].mxu0
      %v535 = vadd.f32 %v374, %v534
      %v536 = vpop.f32.mrb[0].mxu0
      %v537 = vadd.f32 %v378, %v536
      %538 = vmatprep.mubr.bf16.mxu0 0
      %539 = vmatmul.mubr.bf16.gmra.mrb[0].mxu0 %v448
      %v540 = vpop.f32.mrb[0].mxu0
      %v541 = vadd.f32 %v374, %v540
      %v542 = vpop.f32.mrb[0].mxu0
      %v543 = vadd.f32 %v378, %v542
      %v544 = vpop.f32.mrb[0].mxu0
      %v545 = vadd.f32 %v374, %v544
      %v546 = vpop.f32.mrb[0].mxu0
      %v547 = vadd.f32 %v378, %v546
      %548 = vmatprep.mubr.bf16.mxu0 0
      %549 = vmatmul.mubr.bf16.gmra.mrb[0].mxu0 %v451
      %v550 = vpop.f32.mrb[0].mxu0
      %v551 = vadd.f32 %v374, %v550
      %v552 = vpop.f32.mrb[0].mxu0
      %v553 = vadd.f32 %v378, %v552
      %v554 = vpop.f32.mrb[0].mxu0
      %v555 = vadd.f32 %v374, %v554
      %v556 = vpop.f32.mrb[0].mxu0
      %v557 = vadd.f32 %v378, %v556
      %558 = vmatprep.mubr.bf16.mxu0 0
      %559 = vmatmul.mubr.bf16.gmra.mrb[0].mxu0 %v454
      %v560 = vpop.f32.mrb[0].mxu0
      %v561 = vadd.f32 %v374, %v560
      %v562 = vpop.f32.mrb[0].mxu0
      %v563 = vadd.f32 %v378, %v562
      %v564 = vpop.f32.mrb[0].mxu0
      %v565 = vadd.f32 %v374, %v564
      %v566 = vpop.f32.mrb[0].mxu0
      %v567 = vadd.f32 %v378, %v566
      %568 = vdwg.mxu0
      %569 = vmatprep.subr.bf16.mxu0 %v418
      %570 = vmatpush1.bf16.msra.mxu0 %v417
      %571 = vmatprep.subr.bf16.mxu0 %v422
      %572 = vmatpush1.bf16.msra.mxu0 %v421
      %573 = vmatprep.subr.bf16.mxu0 0
      %574 = vmatpush1.bf16.msra.mxu0 0
      %575 = vmatprep.subr.bf16.mxu0 0
      %576 = vmatpush1.bf16.msra.mxu0 0
      %577 = vmatprep.subr.bf16.mxu0 0
      %578 = vmatpush1.bf16.msra.mxu0 0
      %579 = vmatprep.subr.bf16.mxu0 0
      %580 = vmatpush1.bf16.msra.mxu0 0
      %581 = vmatprep.subr.bf16.mxu0 0
      %582 = vmatpush1.bf16.msra.mxu0 0
      %583 = vmatprep.subr.bf16.mxu0 0
      %584 = vmatpush1.bf16.msra.mxu0 0
      %585 = vmatprep.subr.bf16.mxu0 0
      %586 = vmatpush1.bf16.msra.mxu0 0
      %587 = vmatprep.subr.bf16.mxu0 0
      %588 = vmatpush1.bf16.msra.mxu0 0
      %589 = vmatprep.subr.bf16.mxu0 0
      %590 = vmatpush1.bf16.msra.mxu0 0
      %591 = vmatprep.subr.bf16.mxu0 0
      %592 = vmatpush1.bf16.msra.mxu0 0
      %593 = vmatprep.subr.bf16.mxu0 0
      %594 = vmatpush1.bf16.msra.mxu0 0
      %595 = vmatprep.subr.bf16.mxu0 0
      %596 = vmatpush1.bf16.msra.mxu0 0
      %597 = vmatprep.subr.bf16.mxu0 0
      %598 = vmatpush1.bf16.msra.mxu0 0
      %599 = vmatprep.subr.bf16.mxu0 0
      %600 = vmatpush1.bf16.msra.mxu0 0
      %601 = vmatprep.mubr.bf16.mxu0 0
      %602 = vmatmul.mubr.bf16.gmra.mrb[0].mxu0 %v433
      %v603 = vpop.f32.mrb[0].mxu0
      %v604 = vadd.f32 %v382, %v603
      %v605 = vpop.f32.mrb[0].mxu0
      %v606 = vadd.f32 %v386, %v605
      %v607 = vpop.f32.mrb[0].mxu0
      %v608 = vadd.f32 %v382, %v607
      %v609 = vpop.f32.mrb[0].mxu0
      %v610 = vadd.f32 %v386, %v609
      %611 = vmatprep.mubr.bf16.mxu0 0
      %612 = vmatmul.mubr.bf16.gmra.mrb[0].mxu0 %v436
      %v613 = vpop.f32.mrb[0].mxu0
      %v614 = vadd.f32 %v382, %v613
      %v615 = vpop.f32.mrb[0].mxu0
      %v616 = vadd.f32 %v386, %v615
      %v617 = vpop.f32.mrb[0].mxu0
      %v618 = vadd.f32 %v382, %v617
      %v619 = vpop.f32.mrb[0].mxu0
      %v620 = vadd.f32 %v386, %v619
      %621 = vmatprep.mubr.bf16.mxu0 0
      %622 = vmatmul.mubr.bf16.gmra.mrb[0].mxu0 %v439
      %v623 = vpop.f32.mrb[0].mxu0
      %v624 = vadd.f32 %v382, %v623
      %v625 = vpop.f32.mrb[0].mxu0
      %v626 = vadd.f32 %v386, %v625
      %v627 = vpop.f32.mrb[0].mxu0
      %v628 = vadd.f32 %v382, %v627
      %v629 = vpop.f32.mrb[0].mxu0
      %v630 = vadd.f32 %v386, %v629
      %631 = vmatprep.mubr.bf16.mxu0 0
      %632 = vmatmul.mubr.bf16.gmra.mrb[0].mxu0 %v442
      %v633 = vpop.f32.mrb[0].mxu0
      %v634 = vadd.f32 %v382, %v633
      %v635 = vpop.f32.mrb[0].mxu0
      %v636 = vadd.f32 %v386, %v635
      %v637 = vpop.f32.mrb[0].mxu0
      %v638 = vadd.f32 %v382, %v637
      %v639 = vpop.f32.mrb[0].mxu0
      %v640 = vadd.f32 %v386, %v639
      %641 = vmatprep.mubr.bf16.mxu0 0
      %642 = vmatmul.mubr.bf16.gmra.mrb[0].mxu0 %v445
      %v643 = vpop.f32.mrb[0].mxu0
      %v644 = vadd.f32 %v382, %v643
      %v645 = vpop.f32.mrb[0].mxu0
      %v646 = vadd.f32 %v386, %v645
      %v647 = vpop.f32.mrb[0].mxu0
      %v648 = vadd.f32 %v382, %v647
      %v649 = vpop.f32.mrb[0].mxu0
      %v650 = vadd.f32 %v386, %v649
      %651 = vmatprep.mubr.bf16.mxu0 0
      %652 = vmatmul.mubr.bf16.gmra.mrb[0].mxu0 %v448
      %v653 = vpop.f32.mrb[0].mxu0
      %v654 = vadd.f32 %v382, %v653
      %v655 = vpop.f32.mrb[0].mxu0
      %v656 = vadd.f32 %v386, %v655
      %v657 = vpop.f32.mrb[0].mxu0
      %v658 = vadd.f32 %v382, %v657
      %v659 = vpop.f32.mrb[0].mxu0
      %v660 = vadd.f32 %v386, %v659
      %661 = vmatprep.mubr.bf16.mxu0 0
      %662 = vmatmul.mubr.bf16.gmra.mrb[0].mxu0 %v451
      %v663 = vpop.f32.mrb[0].mxu0
      %v664 = vadd.f32 %v382, %v663
      %v665 = vpop.f32.mrb[0].mxu0
      %v666 = vadd.f32 %v386, %v665
      %v667 = vpop.f32.mrb[0].mxu0
      %v668 = vadd.f32 %v382, %v667
      %v669 = vpop.f32.mrb[0].mxu0
      %v670 = vadd.f32 %v386, %v669
      %671 = vmatprep.mubr.bf16.mxu0 0
      %672 = vmatmul.mubr.bf16.gmra.mrb[0].mxu0 %v454
      %v673 = vpop.f32.mrb[0].mxu0
      %v674 = vadd.f32 %v382, %v673
      %v675 = vpop.f32.mrb[0].mxu0
      %v676 = vadd.f32 %v386, %v675
      %v677 = vpop.f32.mrb[0].mxu0
      %v678 = vadd.f32 %v382, %v677
      %v679 = vpop.f32.mrb[0].mxu0
      %v680 = vadd.f32 %v386, %v679
      %681 = vdwg.mxu0
      %v682 = vmax.f32 %v491, 0.0
      %v683 = vmax.f32 %v493, 0.0
      %v684 = vmax.f32 %v604, 0.0
      %v685 = vmax.f32 %v606, 0.0
      %v686 = vmax.f32 %v495, 0.0
      %v687 = vmax.f32 %v497, 0.0
      %v688 = vmax.f32 %v608, 0.0
      %v689 = vmax.f32 %v610, 0.0
      %v690 = vmax.f32 %v501, 0.0
      %v691 = vmax.f32 %v503, 0.0
      %v692 = vmax.f32 %v614, 0.0
      %v693 = vmax.f32 %v616, 0.0
      %v694 = vmax.f32 %v505, 0.0
      %v695 = vmax.f32 %v507, 0.0
      %v696 = vmax.f32 %v618, 0.0
      %v697 = vmax.f32 %v620, 0.0
      %v698 = vmax.f32 %v511, 0.0
      %v699 = vmax.f32 %v513, 0.0
      %v700 = vmax.f32 %v624, 0.0
      %v701 = vmax.f32 %v626, 0.0
      %v702 = vmax.f32 %v515, 0.0
      %v703 = vmax.f32 %v517, 0.0
      %v704 = vmax.f32 %v628, 0.0
      %v705 = vmax.f32 %v630, 0.0
      %v706 = vmax.f32 %v521, 0.0
      %v707 = vmax.f32 %v523, 0.0
      %v708 = vmax.f32 %v634, 0.0
      %v709 = vmax.f32 %v636, 0.0
      %v710 = vmax.f32 %v525, 0.0
      %v711 = vmax.f32 %v527, 0.0
      %v712 = vmax.f32 %v638, 0.0
      %v713 = vmax.f32 %v640, 0.0
      %v714 = vmax.f32 %v531, 0.0
      %v715 = vmax.f32 %v533, 0.0
      %v716 = vmax.f32 %v644, 0.0
      %v717 = vmax.f32 %v646, 0.0
      %v718 = vmax.f32 %v535, 0.0
      %v719 = vmax.f32 %v537, 0.0
      %v720 = vmax.f32 %v648, 0.0
      %v721 = vmax.f32 %v650, 0.0
      %v722 = vmax.f32 %v541, 0.0
      %v723 = vmax.f32 %v543, 0.0
      %v724 = vmax.f32 %v654, 0.0
      %v725 = vmax.f32 %v656, 0.0
      %v726 = vmax.f32 %v545, 0.0
      %v727 = vmax.f32 %v547, 0.0
      %v728 = vmax.f32 %v658, 0.0
      %v729 = vmax.f32 %v660, 0.0
      %v730 = vmax.f32 %v551, 0.0
      %v731 = vmax.f32 %v553, 0.0
      %v732 = vmax.f32 %v664, 0.0
      %v733 = vmax.f32 %v666, 0.0
      %v734 = vmax.f32 %v555, 0.0
      %v735 = vmax.f32 %v557, 0.0
      %v736 = vmax.f32 %v668, 0.0
      %v737 = vmax.f32 %v670, 0.0
      %v738 = vmax.f32 %v561, 0.0
      %v739 = vmax.f32 %v563, 0.0
      %v740 = vmax.f32 %v674, 0.0
      %v741 = vmax.f32 %v676, 0.0
      %v742 = vmax.f32 %v565, 0.0
      %v743 = vmax.f32 %v567, 0.0
      %v744 = vmax.f32 %v678, 0.0
      %v745 = vmax.f32 %v680, 0.0
      %v746 = vpack.c.bf16 %v686, %v682
      %v747 = vpack.c.bf16 %v687, %v683
      %v748 = vpack.c.bf16 %v688, %v684
      %v749 = vpack.c.bf16 %v689, %v685
      %v750 = vpack.c.bf16 %v694, %v690
      %v751 = vpack.c.bf16 %v695, %v691
      %v752 = vpack.c.bf16 %v696, %v692
      %v753 = vpack.c.bf16 %v697, %v693
      %v754 = vpack.c.bf16 %v702, %v698
      %v755 = vpack.c.bf16 %v703, %v699
      %v756 = vpack.c.bf16 %v704, %v700
      %v757 = vpack.c.bf16 %v705, %v701
      %v758 = vpack.c.bf16 %v710, %v706
      %v759 = vpack.c.bf16 %v711, %v707
      %v760 = vpack.c.bf16 %v712, %v708
      %v761 = vpack.c.bf16 %v713, %v709
      %v762 = vpack.c.bf16 %v718, %v714
      %v763 = vpack.c.bf16 %v719, %v715
      %v764 = vpack.c.bf16 %v720, %v716
      %v765 = vpack.c.bf16 %v721, %v717
      %v766 = vpack.c.bf16 %v726, %v722
      %v767 = vpack.c.bf16 %v727, %v723
      %v768 = vpack.c.bf16 %v728, %v724
      %v769 = vpack.c.bf16 %v729, %v725
      %v770 = vpack.c.bf16 %v734, %v730
      %v771 = vpack.c.bf16 %v735, %v731
      %v772 = vpack.c.bf16 %v736, %v732
      %v773 = vpack.c.bf16 %v737, %v733
      %v774 = vpack.c.bf16 %v742, %v738
      %v775 = vpack.c.bf16 %v743, %v739
      %v776 = vpack.c.bf16 %v744, %v740
      %v777 = vpack.c.bf16 %v745, %v741
      %v778 = vld [vmem:[%s3] sm:$0xff]
      %v779 = vld [vmem:[%s3 + $0x8] sm:$0xff]
      %v780 = vld [vmem:[%s3 + $0x10] sm:$0xff]
      %v781 = vld [vmem:[%s3 + $0x18] sm:$0xff]
      %v782 = vld [vmem:[%s3 + $0x20] sm:$0xff]
      %v783 = vld [vmem:[%s3 + $0x28] sm:$0xff]
      %v784 = vld [vmem:[%s3 + $0x30] sm:$0xff]
      %v785 = vld [vmem:[%s3 + $0x38] sm:$0xff]
      %v786 = vld [vmem:[%s3 + $0x40] sm:$0xff]
      %v787 = vld [vmem:[%s3 + $0x48] sm:$0xff]
      %v788 = vld [vmem:[%s3 + $0x50] sm:$0xff]
      %v789 = vld [vmem:[%s3 + $0x58] sm:$0xff]
      %v790 = vld [vmem:[%s3 + $0x60] sm:$0xff]
      %v791 = vld [vmem:[%s3 + $0x68] sm:$0xff]
      %v792 = vld [vmem:[%s3 + $0x70] sm:$0xff]
      %v793 = vld [vmem:[%s3 + $0x78] sm:$0xff]
      %v794 = vld [vmem:[%s3 + $0x80] sm:$0xff]
      %v795 = vld [vmem:[%s3 + $0x88] sm:$0xff]
      %v796 = vld [vmem:[%s3 + $0x90] sm:$0xff]
      %v797 = vld [vmem:[%s3 + $0x98] sm:$0xff]
      %v798 = vld [vmem:[%s3 + $0xa0] sm:$0xff]
      %v799 = vld [vmem:[%s3 + $0xa8] sm:$0xff]
      %v800 = vld [vmem:[%s3 + $0xb0] sm:$0xff]
      %v801 = vld [vmem:[%s3 + $0xb8] sm:$0xff]
      %v802 = vld [vmem:[%s3 + $0xc0] sm:$0xff]
      %v803 = vld [vmem:[%s3 + $0xc8] sm:$0xff]
      %v804 = vld [vmem:[%s3 + $0xd0] sm:$0xff]
      %v805 = vld [vmem:[%s3 + $0xd8] sm:$0xff]
      %v806 = vld [vmem:[%s3 + $0xe0] sm:$0xff]
      %v807 = vld [vmem:[%s3 + $0xe8] sm:$0xff]
      %v808 = vld [vmem:[%s3 + $0xf0] sm:$0xff]
      %v809 = vld [vmem:[%s3 + $0xf8] sm:$0xff]
      %v810 = vld [vmem:[%s3 + $0x100] sm:$0xff]
      %v811 = vld [vmem:[%s3 + $0x108] sm:$0xff]
      %v812 = vld [vmem:[%s3 + $0x110] sm:$0xff]
      %v813 = vld [vmem:[%s3 + $0x118] sm:$0xff]
      %v814 = vld [vmem:[%s3 + $0x120] sm:$0xff]
      %v815 = vld [vmem:[%s3 + $0x128] sm:$0xff]
      %v816 = vld [vmem:[%s3 + $0x130] sm:$0xff]
      %v817 = vld [vmem:[%s3 + $0x138] sm:$0xff]
      %v818 = vld [vmem:[%s3 + $0x140] sm:$0xff]
      %v819 = vld [vmem:[%s3 + $0x148] sm:$0xff]
      %v820 = vld [vmem:[%s3 + $0x150] sm:$0xff]
      %v821 = vld [vmem:[%s3 + $0x158] sm:$0xff]
      %v822 = vld [vmem:[%s3 + $0x160] sm:$0xff]
      %v823 = vld [vmem:[%s3 + $0x168] sm:$0xff]
      %v824 = vld [vmem:[%s3 + $0x170] sm:$0xff]
      %v825 = vld [vmem:[%s3 + $0x178] sm:$0xff]
      %v826 = vld [vmem:[%s3 + $0x180] sm:$0xff]
      %v827 = vld [vmem:[%s3 + $0x188] sm:$0xff]
      %v828 = vld [vmem:[%s3 + $0x190] sm:$0xff]
      %v829 = vld [vmem:[%s3 + $0x198] sm:$0xff]
      %v830 = vld [vmem:[%s3 + $0x1a0] sm:$0xff]
      %v831 = vld [vmem:[%s3 + $0x1a8] sm:$0xff]
      %v832 = vld [vmem:[%s3 + $0x1b0] sm:$0xff]
      %v833 = vld [vmem:[%s3 + $0x1b8] sm:$0xff]
      %v834 = vld [vmem:[%s3 + $0x1c0] sm:$0xff]
      %v835 = vld [vmem:[%s3 + $0x1c8] sm:$0xff]
      %v836 = vld [vmem:[%s3 + $0x1d0] sm:$0xff]
      %v837 = vld [vmem:[%s3 + $0x1d8] sm:$0xff]
      %v838 = vld [vmem:[%s3 + $0x1e0] sm:$0xff]
      %v839 = vld [vmem:[%s3 + $0x1e8] sm:$0xff]
      %v840 = vld [vmem:[%s3 + $0x1f0] sm:$0xff]
      %v841 = vld [vmem:[%s3 + $0x1f8] sm:$0xff]
      %v842 = vld [vmem:[%s4] sm:$0x3]
      %v844 = vlaneseq
      %v845 = vshrl.u32 %v844, 7
      %v846 = vsub.s32 0, %v845
      %v847 = vrot.slane %v842, %v846
      %v848 = vlaneseq
      %v849 = vshrl.u32 %v848, 7
      %v850 = vsub.s32 1, %v849
      %v851 = vrot.slane %v842, %v850
      %v918 = vunpack.c.l.b16 %v778
      %v919 = vunpack.c.h.b16 %v778
      %v920 = vunpack.c.l.b16 %v779
      %v921 = vunpack.c.h.b16 %v779
      %v922 = vunpack.c.l.b16 %v780
      %v923 = vunpack.c.h.b16 %v780
      %v924 = vunpack.c.l.b16 %v781
      %v925 = vunpack.c.h.b16 %v781
      %v926 = vunpack.c.l.b16 %v782
      %v927 = vunpack.c.h.b16 %v782
      %v928 = vunpack.c.l.b16 %v783
      %v929 = vunpack.c.h.b16 %v783
      %v930 = vunpack.c.l.b16 %v784
      %v931 = vunpack.c.h.b16 %v784
      %v932 = vunpack.c.l.b16 %v785
      %v933 = vunpack.c.h.b16 %v785
      %v934 = vunpack.c.l.b16 %v786
      %v935 = vunpack.c.h.b16 %v786
      %v936 = vunpack.c.l.b16 %v787
      %v937 = vunpack.c.h.b16 %v787
      %v938 = vunpack.c.l.b16 %v788
      %v939 = vunpack.c.h.b16 %v788
      %v940 = vunpack.c.l.b16 %v789
      %v941 = vunpack.c.h.b16 %v789
      %v942 = vunpack.c.l.b16 %v790
      %v943 = vunpack.c.h.b16 %v790
      %v944 = vunpack.c.l.b16 %v791
      %v945 = vunpack.c.h.b16 %v791
      %v946 = vunpack.c.l.b16 %v792
      %v947 = vunpack.c.h.b16 %v792
      %v948 = vunpack.c.l.b16 %v793
      %v949 = vunpack.c.h.b16 %v793
      %v950 = vunpack.c.l.b16 %v794
      %v951 = vunpack.c.h.b16 %v794
      %v952 = vunpack.c.l.b16 %v795
      %v953 = vunpack.c.h.b16 %v795
      %v954 = vunpack.c.l.b16 %v796
      %v955 = vunpack.c.h.b16 %v796
      %v956 = vunpack.c.l.b16 %v797
      %v957 = vunpack.c.h.b16 %v797
      %v958 = vunpack.c.l.b16 %v798
      %v959 = vunpack.c.h.b16 %v798
      %v960 = vunpack.c.l.b16 %v799
      %v961 = vunpack.c.h.b16 %v799
      %v962 = vunpack.c.l.b16 %v800
      %v963 = vunpack.c.h.b16 %v800
      %v964 = vunpack.c.l.b16 %v801
      %v965 = vunpack.c.h.b16 %v801
      %v966 = vunpack.c.l.b16 %v802
      %v967 = vunpack.c.h.b16 %v802
      %v968 = vunpack.c.l.b16 %v803
      %v969 = vunpack.c.h.b16 %v803
      %v970 = vunpack.c.l.b16 %v804
      %v971 = vunpack.c.h.b16 %v804
      %v972 = vunpack.c.l.b16 %v805
      %v973 = vunpack.c.h.b16 %v805
      %v974 = vunpack.c.l.b16 %v806
      %v975 = vunpack.c.h.b16 %v806
      %v976 = vunpack.c.l.b16 %v807
      %v977 = vunpack.c.h.b16 %v807
      %v978 = vunpack.c.l.b16 %v808
      %v979 = vunpack.c.h.b16 %v808
      %v980 = vunpack.c.l.b16 %v809
      %v981 = vunpack.c.h.b16 %v809
      %v982 = vunpack.c.l.b16 %v810
      %v983 = vunpack.c.h.b16 %v810
      %v984 = vunpack.c.l.b16 %v811
      %v985 = vunpack.c.h.b16 %v811
      %v986 = vunpack.c.l.b16 %v812
      %v987 = vunpack.c.h.b16 %v812
      %v988 = vunpack.c.l.b16 %v813
      %v989 = vunpack.c.h.b16 %v813
      %v990 = vunpack.c.l.b16 %v814
      %v991 = vunpack.c.h.b16 %v814
      %v992 = vunpack.c.l.b16 %v815
      %v993 = vunpack.c.h.b16 %v815
      %v994 = vunpack.c.l.b16 %v816
      %v995 = vunpack.c.h.b16 %v816
      %v996 = vunpack.c.l.b16 %v817
      %v997 = vunpack.c.h.b16 %v817
      %v998 = vunpack.c.l.b16 %v818
      %v999 = vunpack.c.h.b16 %v818
      %v1000 = vunpack.c.l.b16 %v819
      %v1001 = vunpack.c.h.b16 %v819
      %v1002 = vunpack.c.l.b16 %v820
      %v1003 = vunpack.c.h.b16 %v820
      %v1004 = vunpack.c.l.b16 %v821
      %v1005 = vunpack.c.h.b16 %v821
      %v1006 = vunpack.c.l.b16 %v822
      %v1007 = vunpack.c.h.b16 %v822
      %v1008 = vunpack.c.l.b16 %v823
      %v1009 = vunpack.c.h.b16 %v823
      %v1010 = vunpack.c.l.b16 %v824
      %v1011 = vunpack.c.h.b16 %v824
      %v1012 = vunpack.c.l.b16 %v825
      %v1013 = vunpack.c.h.b16 %v825
      %v1014 = vunpack.c.l.b16 %v826
      %v1015 = vunpack.c.h.b16 %v826
      %v1016 = vunpack.c.l.b16 %v827
      %v1017 = vunpack.c.h.b16 %v827
      %v1018 = vunpack.c.l.b16 %v828
      %v1019 = vunpack.c.h.b16 %v828
      %v1020 = vunpack.c.l.b16 %v829
      %v1021 = vunpack.c.h.b16 %v829
      %v1022 = vunpack.c.l.b16 %v830
      %v1023 = vunpack.c.h.b16 %v830
      %v1024 = vunpack.c.l.b16 %v831
      %v1025 = vunpack.c.h.b16 %v831
      %v1026 = vunpack.c.l.b16 %v832
      %v1027 = vunpack.c.h.b16 %v832
      %v1028 = vunpack.c.l.b16 %v833
      %v1029 = vunpack.c.h.b16 %v833
      %v1030 = vunpack.c.l.b16 %v834
      %v1031 = vunpack.c.h.b16 %v834
      %v1032 = vunpack.c.l.b16 %v835
      %v1033 = vunpack.c.h.b16 %v835
      %v1034 = vunpack.c.l.b16 %v836
      %v1035 = vunpack.c.h.b16 %v836
      %v1036 = vunpack.c.l.b16 %v837
      %v1037 = vunpack.c.h.b16 %v837
      %v1038 = vunpack.c.l.b16 %v838
      %v1039 = vunpack.c.h.b16 %v838
      %v1040 = vunpack.c.l.b16 %v839
      %v1041 = vunpack.c.h.b16 %v839
      %v1042 = vunpack.c.l.b16 %v840
      %v1043 = vunpack.c.h.b16 %v840
      %v1044 = vunpack.c.l.b16 %v841
      %v1045 = vunpack.c.h.b16 %v841
      %v1046 = vpack.c.b16 %v920, %v918
      %v1047 = vpack.c.b16 %v921, %v919
      %v1048 = vpack.c.b16 %v924, %v922
      %v1049 = vpack.c.b16 %v925, %v923
      %v1050 = vpack.c.b16 %v928, %v926
      %v1051 = vpack.c.b16 %v929, %v927
      %v1052 = vpack.c.b16 %v932, %v930
      %v1053 = vpack.c.b16 %v933, %v931
      %v1054 = vpack.c.b16 %v936, %v934
      %v1055 = vpack.c.b16 %v937, %v935
      %v1056 = vpack.c.b16 %v940, %v938
      %v1057 = vpack.c.b16 %v941, %v939
      %v1058 = vpack.c.b16 %v944, %v942
      %v1059 = vpack.c.b16 %v945, %v943
      %v1060 = vpack.c.b16 %v948, %v946
      %v1061 = vpack.c.b16 %v949, %v947
      %v1062 = vpack.c.b16 %v952, %v950
      %v1063 = vpack.c.b16 %v953, %v951
      %v1064 = vpack.c.b16 %v956, %v954
      %v1065 = vpack.c.b16 %v957, %v955
      %v1066 = vpack.c.b16 %v960, %v958
      %v1067 = vpack.c.b16 %v961, %v959
      %v1068 = vpack.c.b16 %v964, %v962
      %v1069 = vpack.c.b16 %v965, %v963
      %v1070 = vpack.c.b16 %v968, %v966
      %v1071 = vpack.c.b16 %v969, %v967
      %v1072 = vpack.c.b16 %v972, %v970
      %v1073 = vpack.c.b16 %v973, %v971
      %v1074 = vpack.c.b16 %v976, %v974
      %v1075 = vpack.c.b16 %v977, %v975
      %v1076 = vpack.c.b16 %v980, %v978
      %v1077 = vpack.c.b16 %v981, %v979
      %v1078 = vpack.c.b16 %v984, %v982
      %v1079 = vpack.c.b16 %v985, %v983
      %v1080 = vpack.c.b16 %v988, %v986
      %v1081 = vpack.c.b16 %v989, %v987
      %v1082 = vpack.c.b16 %v992, %v990
      %v1083 = vpack.c.b16 %v993, %v991
      %v1084 = vpack.c.b16 %v996, %v994
      %v1085 = vpack.c.b16 %v997, %v995
      %v1086 = vpack.c.b16 %v1000, %v998
      %v1087 = vpack.c.b16 %v1001, %v999
      %v1088 = vpack.c.b16 %v1004, %v1002
      %v1089 = vpack.c.b16 %v1005, %v1003
      %v1090 = vpack.c.b16 %v1008, %v1006
      %v1091 = vpack.c.b16 %v1009, %v1007
      %v1092 = vpack.c.b16 %v1012, %v1010
      %v1093 = vpack.c.b16 %v1013, %v1011
      %v1094 = vpack.c.b16 %v1016, %v1014
      %v1095 = vpack.c.b16 %v1017, %v1015
      %v1096 = vpack.c.b16 %v1020, %v1018
      %v1097 = vpack.c.b16 %v1021, %v1019
      %v1098 = vpack.c.b16 %v1024, %v1022
      %v1099 = vpack.c.b16 %v1025, %v1023
      %v1100 = vpack.c.b16 %v1028, %v1026
      %v1101 = vpack.c.b16 %v1029, %v1027
      %v1102 = vpack.c.b16 %v1032, %v1030
      %v1103 = vpack.c.b16 %v1033, %v1031
      %v1104 = vpack.c.b16 %v1036, %v1034
      %v1105 = vpack.c.b16 %v1037, %v1035
      %v1106 = vpack.c.b16 %v1040, %v1038
      %v1107 = vpack.c.b16 %v1041, %v1039
      %v1108 = vpack.c.b16 %v1044, %v1042
      %v1109 = vpack.c.b16 %v1045, %v1043
      %1174 = vmatprep.subr.bf16.mxu0 %v1047
      %1175 = vmatpush1.bf16.msra.mxu0 %v1046
      %1176 = vmatprep.subr.bf16.mxu0 %v1049
      %1177 = vmatpush1.bf16.msra.mxu0 %v1048
      %1178 = vmatprep.subr.bf16.mxu0 %v1051
      %1179 = vmatpush1.bf16.msra.mxu0 %v1050
      %1180 = vmatprep.subr.bf16.mxu0 %v1053
      %1181 = vmatpush1.bf16.msra.mxu0 %v1052
      %1182 = vmatprep.subr.bf16.mxu0 %v1055
      %1183 = vmatpush1.bf16.msra.mxu0 %v1054
      %1184 = vmatprep.subr.bf16.mxu0 %v1057
      %1185 = vmatpush1.bf16.msra.mxu0 %v1056
      %1186 = vmatprep.subr.bf16.mxu0 %v1059
      %1187 = vmatpush1.bf16.msra.mxu0 %v1058
      %1188 = vmatprep.subr.bf16.mxu0 %v1061
      %1189 = vmatpush1.bf16.msra.mxu0 %v1060
      %1190 = vmatprep.subr.bf16.mxu0 %v1063
      %1191 = vmatpush1.bf16.msra.mxu0 %v1062
      %1192 = vmatprep.subr.bf16.mxu0 %v1065
      %1193 = vmatpush1.bf16.msra.mxu0 %v1064
      %1194 = vmatprep.subr.bf16.mxu0 %v1067
      %1195 = vmatpush1.bf16.msra.mxu0 %v1066
      %1196 = vmatprep.subr.bf16.mxu0 %v1069
      %1197 = vmatpush1.bf16.msra.mxu0 %v1068
      %1198 = vmatprep.subr.bf16.mxu0 %v1071
      %1199 = vmatpush1.bf16.msra.mxu0 %v1070
      %1200 = vmatprep.subr.bf16.mxu0 %v1073
      %1201 = vmatpush1.bf16.msra.mxu0 %v1072
      %1202 = vmatprep.subr.bf16.mxu0 %v1075
      %1203 = vmatpush1.bf16.msra.mxu0 %v1074
      %1204 = vmatprep.subr.bf16.mxu0 %v1077
      %1205 = vmatpush1.bf16.msra.mxu0 %v1076
      %1206 = vmatprep.mubr.bf16.mxu0 %v747
      %1207 = vmatmul.mubr.bf16.gmra.mrb[0].mxu0 %v746
      %v1208 = vpop.f32.mrb[0].mxu0
      %v1209 = vadd.f32 %v847, %v1208
      %v1210 = vpop.f32.mrb[0].mxu0
      %v1211 = vadd.f32 %v851, %v1210
      %v1212 = vpop.f32.mrb[0].mxu0
      %v1213 = vadd.f32 %v847, %v1212
      %v1214 = vpop.f32.mrb[0].mxu0
      %v1215 = vadd.f32 %v851, %v1214
      %1216 = vmatprep.mubr.bf16.mxu0 %v751
      %1217 = vmatmul.mubr.bf16.gmra.mrb[0].mxu0 %v750
      %v1218 = vpop.f32.mrb[0].mxu0
      %v1219 = vadd.f32 %v847, %v1218
      %v1220 = vpop.f32.mrb[0].mxu0
      %v1221 = vadd.f32 %v851, %v1220
      %v1222 = vpop.f32.mrb[0].mxu0
      %v1223 = vadd.f32 %v847, %v1222
      %v1224 = vpop.f32.mrb[0].mxu0
      %v1225 = vadd.f32 %v851, %v1224
      %1226 = vmatprep.mubr.bf16.mxu0 %v755
      %1227 = vmatmul.mubr.bf16.gmra.mrb[0].mxu0 %v754
      %v1228 = vpop.f32.mrb[0].mxu0
      %v1229 = vadd.f32 %v847, %v1228
      %v1230 = vpop.f32.mrb[0].mxu0
      %v1231 = vadd.f32 %v851, %v1230
      %v1232 = vpop.f32.mrb[0].mxu0
      %v1233 = vadd.f32 %v847, %v1232
      %v1234 = vpop.f32.mrb[0].mxu0
      %v1235 = vadd.f32 %v851, %v1234
      %1236 = vmatprep.mubr.bf16.mxu0 %v759
      %1237 = vmatmul.mubr.bf16.gmra.mrb[0].mxu0 %v758
      %v1238 = vpop.f32.mrb[0].mxu0
      %v1239 = vadd.f32 %v847, %v1238
      %v1240 = vpop.f32.mrb[0].mxu0
      %v1241 = vadd.f32 %v851, %v1240
      %v1242 = vpop.f32.mrb[0].mxu0
      %v1243 = vadd.f32 %v847, %v1242
      %v1244 = vpop.f32.mrb[0].mxu0
      %v1245 = vadd.f32 %v851, %v1244
      %1246 = vmatprep.mubr.bf16.mxu0 %v763
      %1247 = vmatmul.mubr.bf16.gmra.mrb[0].mxu0 %v762
      %v1248 = vpop.f32.mrb[0].mxu0
      %v1249 = vadd.f32 %v847, %v1248
      %v1250 = vpop.f32.mrb[0].mxu0
      %v1251 = vadd.f32 %v851, %v1250
      %v1252 = vpop.f32.mrb[0].mxu0
      %v1253 = vadd.f32 %v847, %v1252
      %v1254 = vpop.f32.mrb[0].mxu0
      %v1255 = vadd.f32 %v851, %v1254
      %1256 = vmatprep.mubr.bf16.mxu0 %v767
      %1257 = vmatmul.mubr.bf16.gmra.mrb[0].mxu0 %v766
      %v1258 = vpop.f32.mrb[0].mxu0
      %v1259 = vadd.f32 %v847, %v1258
      %v1260 = vpop.f32.mrb[0].mxu0
      %v1261 = vadd.f32 %v851, %v1260
      %v1262 = vpop.f32.mrb[0].mxu0
      %v1263 = vadd.f32 %v847, %v1262
      %v1264 = vpop.f32.mrb[0].mxu0
      %v1265 = vadd.f32 %v851, %v1264
      %1266 = vmatprep.mubr.bf16.mxu0 %v771
      %1267 = vmatmul.mubr.bf16.gmra.mrb[0].mxu0 %v770
      %v1268 = vpop.f32.mrb[0].mxu0
      %v1269 = vadd.f32 %v847, %v1268
      %v1270 = vpop.f32.mrb[0].mxu0
      %v1271 = vadd.f32 %v851, %v1270
      %v1272 = vpop.f32.mrb[0].mxu0
      %v1273 = vadd.f32 %v847, %v1272
      %v1274 = vpop.f32.mrb[0].mxu0
      %v1275 = vadd.f32 %v851, %v1274
      %1276 = vmatprep.mubr.bf16.mxu0 %v775
      %1277 = vmatmul.mubr.bf16.gmra.mrb[0].mxu0 %v774
      %v1278 = vpop.f32.mrb[0].mxu0
      %v1279 = vadd.f32 %v847, %v1278
      %v1280 = vpop.f32.mrb[0].mxu0
      %v1281 = vadd.f32 %v851, %v1280
      %v1282 = vpop.f32.mrb[0].mxu0
      %v1283 = vadd.f32 %v847, %v1282
      %v1284 = vpop.f32.mrb[0].mxu0
      %v1285 = vadd.f32 %v851, %v1284
      %1286 = vdwg.mxu0
      %1287 = vmatprep.subr.bf16.mxu0 %v1079
      %1288 = vmatpush1.bf16.msra.mxu0 %v1078
      %1289 = vmatprep.subr.bf16.mxu0 %v1081
      %1290 = vmatpush1.bf16.msra.mxu0 %v1080
      %1291 = vmatprep.subr.bf16.mxu0 %v1083
      %1292 = vmatpush1.bf16.msra.mxu0 %v1082
      %1293 = vmatprep.subr.bf16.mxu0 %v1085
      %1294 = vmatpush1.bf16.msra.mxu0 %v1084
      %1295 = vmatprep.subr.bf16.mxu0 %v1087
      %1296 = vmatpush1.bf16.msra.mxu0 %v1086
      %1297 = vmatprep.subr.bf16.mxu0 %v1089
      %1298 = vmatpush1.bf16.msra.mxu0 %v1088
      %1299 = vmatprep.subr.bf16.mxu0 %v1091
      %1300 = vmatpush1.bf16.msra.mxu0 %v1090
      %1301 = vmatprep.subr.bf16.mxu0 %v1093
      %1302 = vmatpush1.bf16.msra.mxu0 %v1092
      %1303 = vmatprep.subr.bf16.mxu0 %v1095
      %1304 = vmatpush1.bf16.msra.mxu0 %v1094
      %1305 = vmatprep.subr.bf16.mxu0 %v1097
      %1306 = vmatpush1.bf16.msra.mxu0 %v1096
      %1307 = vmatprep.subr.bf16.mxu0 %v1099
      %1308 = vmatpush1.bf16.msra.mxu0 %v1098
      %1309 = vmatprep.subr.bf16.mxu0 %v1101
      %1310 = vmatpush1.bf16.msra.mxu0 %v1100
      %1311 = vmatprep.subr.bf16.mxu0 %v1103
      %1312 = vmatpush1.bf16.msra.mxu0 %v1102
      %1313 = vmatprep.subr.bf16.mxu0 %v1105
      %1314 = vmatpush1.bf16.msra.mxu0 %v1104
      %1315 = vmatprep.subr.bf16.mxu0 %v1107
      %1316 = vmatpush1.bf16.msra.mxu0 %v1106
      %1317 = vmatprep.subr.bf16.mxu0 %v1109
      %1318 = vmatpush1.bf16.msra.mxu0 %v1108
      %1319 = vmatprep.mubr.bf16.mxu0 %v749
      %1320 = vmatmul.mubr.bf16.gmra.mrb[0].mxu0 %v748
      %v1321 = vpop.f32.mrb[0].mxu0
      %v1322 = vadd.f32 %v1209, %v1321
      %v1323 = vpop.f32.mrb[0].mxu0
      %v1324 = vadd.f32 %v1211, %v1323
      %v1325 = vpop.f32.mrb[0].mxu0
      %v1326 = vadd.f32 %v1213, %v1325
      %v1327 = vpop.f32.mrb[0].mxu0
      %v1328 = vadd.f32 %v1215, %v1327
      %1329 = vmatprep.mubr.bf16.mxu0 %v753
      %1330 = vmatmul.mubr.bf16.gmra.mrb[0].mxu0 %v752
      %v1331 = vpop.f32.mrb[0].mxu0
      %v1332 = vadd.f32 %v1219, %v1331
      %v1333 = vpop.f32.mrb[0].mxu0
      %v1334 = vadd.f32 %v1221, %v1333
      %v1335 = vpop.f32.mrb[0].mxu0
      %v1336 = vadd.f32 %v1223, %v1335
      %v1337 = vpop.f32.mrb[0].mxu0
      %v1338 = vadd.f32 %v1225, %v1337
      %1339 = vmatprep.mubr.bf16.mxu0 %v757
      %1340 = vmatmul.mubr.bf16.gmra.mrb[0].mxu0 %v756
      %v1341 = vpop.f32.mrb[0].mxu0
      %v1342 = vadd.f32 %v1229, %v1341
      %v1343 = vpop.f32.mrb[0].mxu0
      %v1344 = vadd.f32 %v1231, %v1343
      %v1345 = vpop.f32.mrb[0].mxu0
      %v1346 = vadd.f32 %v1233, %v1345
      %v1347 = vpop.f32.mrb[0].mxu0
      %v1348 = vadd.f32 %v1235, %v1347
      %1349 = vmatprep.mubr.bf16.mxu0 %v761
      %1350 = vmatmul.mubr.bf16.gmra.mrb[0].mxu0 %v760
      %v1351 = vpop.f32.mrb[0].mxu0
      %v1352 = vadd.f32 %v1239, %v1351
      %v1353 = vpop.f32.mrb[0].mxu0
      %v1354 = vadd.f32 %v1241, %v1353
      %v1355 = vpop.f32.mrb[0].mxu0
      %v1356 = vadd.f32 %v1243, %v1355
      %v1357 = vpop.f32.mrb[0].mxu0
      %v1358 = vadd.f32 %v1245, %v1357
      %1359 = vmatprep.mubr.bf16.mxu0 %v765
      %1360 = vmatmul.mubr.bf16.gmra.mrb[0].mxu0 %v764
      %v1361 = vpop.f32.mrb[0].mxu0
      %v1362 = vadd.f32 %v1249, %v1361
      %v1363 = vpop.f32.mrb[0].mxu0
      %v1364 = vadd.f32 %v1251, %v1363
      %v1365 = vpop.f32.mrb[0].mxu0
      %v1366 = vadd.f32 %v1253, %v1365
      %v1367 = vpop.f32.mrb[0].mxu0
      %v1368 = vadd.f32 %v1255, %v1367
      %1369 = vmatprep.mubr.bf16.mxu0 %v769
      %1370 = vmatmul.mubr.bf16.gmra.mrb[0].mxu0 %v768
      %v1371 = vpop.f32.mrb[0].mxu0
      %v1372 = vadd.f32 %v1259, %v1371
      %v1373 = vpop.f32.mrb[0].mxu0
      %v1374 = vadd.f32 %v1261, %v1373
      %v1375 = vpop.f32.mrb[0].mxu0
      %v1376 = vadd.f32 %v1263, %v1375
      %v1377 = vpop.f32.mrb[0].mxu0
      %v1378 = vadd.f32 %v1265, %v1377
      %1379 = vmatprep.mubr.bf16.mxu0 %v773
      %1380 = vmatmul.mubr.bf16.gmra.mrb[0].mxu0 %v772
      %v1381 = vpop.f32.mrb[0].mxu0
      %v1382 = vadd.f32 %v1269, %v1381
      %v1383 = vpop.f32.mrb[0].mxu0
      %v1384 = vadd.f32 %v1271, %v1383
      %v1385 = vpop.f32.mrb[0].mxu0
      %v1386 = vadd.f32 %v1273, %v1385
      %v1387 = vpop.f32.mrb[0].mxu0
      %v1388 = vadd.f32 %v1275, %v1387
      %1389 = vmatprep.mubr.bf16.mxu0 %v777
      %1390 = vmatmul.mubr.bf16.gmra.mrb[0].mxu0 %v776
      %v1391 = vpop.f32.mrb[0].mxu0
      %v1392 = vadd.f32 %v1279, %v1391
      %v1393 = vpop.f32.mrb[0].mxu0
      %v1394 = vadd.f32 %v1281, %v1393
      %v1395 = vpop.f32.mrb[0].mxu0
      %v1396 = vadd.f32 %v1283, %v1395
      %v1397 = vpop.f32.mrb[0].mxu0
      %v1398 = vadd.f32 %v1285, %v1397
      %1399 = vdwg.mxu0
      %v1400 = vmax.f32 %v1322, 0.0
      %v1401 = vmax.f32 %v1324, 0.0
      %v1402 = vmax.f32 %v1326, 0.0
      %v1403 = vmax.f32 %v1328, 0.0
      %v1404 = vmax.f32 %v1332, 0.0
      %v1405 = vmax.f32 %v1334, 0.0
      %v1406 = vmax.f32 %v1336, 0.0
      %v1407 = vmax.f32 %v1338, 0.0
      %v1408 = vmax.f32 %v1342, 0.0
      %v1409 = vmax.f32 %v1344, 0.0
      %v1410 = vmax.f32 %v1346, 0.0
      %v1411 = vmax.f32 %v1348, 0.0
      %v1412 = vmax.f32 %v1352, 0.0
      %v1413 = vmax.f32 %v1354, 0.0
      %v1414 = vmax.f32 %v1356, 0.0
      %v1415 = vmax.f32 %v1358, 0.0
      %v1416 = vmax.f32 %v1362, 0.0
      %v1417 = vmax.f32 %v1364, 0.0
      %v1418 = vmax.f32 %v1366, 0.0
      %v1419 = vmax.f32 %v1368, 0.0
      %v1420 = vmax.f32 %v1372, 0.0
      %v1421 = vmax.f32 %v1374, 0.0
      %v1422 = vmax.f32 %v1376, 0.0
      %v1423 = vmax.f32 %v1378, 0.0
      %v1424 = vmax.f32 %v1382, 0.0
      %v1425 = vmax.f32 %v1384, 0.0
      %v1426 = vmax.f32 %v1386, 0.0
      %v1427 = vmax.f32 %v1388, 0.0
      %v1428 = vmax.f32 %v1392, 0.0
      %v1429 = vmax.f32 %v1394, 0.0
      %v1430 = vmax.f32 %v1396, 0.0
      %v1431 = vmax.f32 %v1398, 0.0
      %v1432 = vpack.c.bf16 %v1402, %v1400
      %v1433 = vpack.c.bf16 %v1403, %v1401
      %v1434 = vpack.c.bf16 %v1406, %v1404
      %v1435 = vpack.c.bf16 %v1407, %v1405
      %v1436 = vpack.c.bf16 %v1410, %v1408
      %v1437 = vpack.c.bf16 %v1411, %v1409
      %v1438 = vpack.c.bf16 %v1414, %v1412
      %v1439 = vpack.c.bf16 %v1415, %v1413
      %v1440 = vpack.c.bf16 %v1418, %v1416
      %v1441 = vpack.c.bf16 %v1419, %v1417
      %v1442 = vpack.c.bf16 %v1422, %v1420
      %v1443 = vpack.c.bf16 %v1423, %v1421
      %v1444 = vpack.c.bf16 %v1426, %v1424
      %v1445 = vpack.c.bf16 %v1427, %v1425
      %v1446 = vpack.c.bf16 %v1430, %v1428
      %v1447 = vpack.c.bf16 %v1431, %v1429
      %v1448 = vld [vmem:[%s5] sm:$0xf]
      %v1449 = vld [vmem:[%s5 + $0x4] sm:$0xf]
      %v1450 = vld [vmem:[%s5 + $0x8] sm:$0xf]
      %v1451 = vld [vmem:[%s5 + $0xc] sm:$0xf]
      %v1452 = vld [vmem:[%s5 + $0x10] sm:$0xf]
      %v1453 = vld [vmem:[%s5 + $0x14] sm:$0xf]
      %v1454 = vld [vmem:[%s5 + $0x18] sm:$0xf]
      %v1455 = vld [vmem:[%s5 + $0x1c] sm:$0xf]
      %v1456 = vld [vmem:[%s5 + $0x20] sm:$0xf]
      %v1457 = vld [vmem:[%s5 + $0x24] sm:$0xf]
      %v1458 = vld [vmem:[%s5 + $0x28] sm:$0xf]
      %v1459 = vld [vmem:[%s5 + $0x2c] sm:$0xf]
      %v1460 = vld [vmem:[%s5 + $0x30] sm:$0xf]
      %v1461 = vld [vmem:[%s5 + $0x34] sm:$0xf]
      %v1462 = vld [vmem:[%s5 + $0x38] sm:$0xf]
      %v1463 = vld [vmem:[%s5 + $0x3c] sm:$0xf]
      %v1464 = vld [vmem:[%s5 + $0x40] sm:$0xf]
      %v1465 = vld [vmem:[%s5 + $0x44] sm:$0xf]
      %v1466 = vld [vmem:[%s5 + $0x48] sm:$0xf]
      %v1467 = vld [vmem:[%s5 + $0x4c] sm:$0xf]
      %v1468 = vld [vmem:[%s5 + $0x50] sm:$0xf]
      %v1469 = vld [vmem:[%s5 + $0x54] sm:$0xf]
      %v1470 = vld [vmem:[%s5 + $0x58] sm:$0xf]
      %v1471 = vld [vmem:[%s5 + $0x5c] sm:$0xf]
      %v1472 = vld [vmem:[%s5 + $0x60] sm:$0xf]
      %v1473 = vld [vmem:[%s5 + $0x64] sm:$0xf]
      %v1474 = vld [vmem:[%s5 + $0x68] sm:$0xf]
      %v1475 = vld [vmem:[%s5 + $0x6c] sm:$0xf]
      %v1476 = vld [vmem:[%s5 + $0x70] sm:$0xf]
      %v1477 = vld [vmem:[%s5 + $0x74] sm:$0xf]
      %v1478 = vld [vmem:[%s5 + $0x78] sm:$0xf]
      %v1479 = vld [vmem:[%s5 + $0x7c] sm:$0xf]
      %v1480 = vld [vmem:[%s6] sm:$0x1]
      %v1482 = vlaneseq
      %v1483 = vshrl.u32 %v1482, 7
      %v1484 = vsub.s32 0, %v1483
      %v1485 = vrot.slane %v1480, %v1484
      %v1519 = vunpack.c.l.b16 %v1448
      %v1520 = vunpack.c.l.b16 %v1449
      %v1521 = vunpack.c.l.b16 %v1450
      %v1522 = vunpack.c.l.b16 %v1451
      %v1523 = vunpack.c.l.b16 %v1452
      %v1524 = vunpack.c.l.b16 %v1453
      %v1525 = vunpack.c.l.b16 %v1454
      %v1526 = vunpack.c.l.b16 %v1455
      %v1527 = vunpack.c.l.b16 %v1456
      %v1528 = vunpack.c.l.b16 %v1457
      %v1529 = vunpack.c.l.b16 %v1458
      %v1530 = vunpack.c.l.b16 %v1459
      %v1531 = vunpack.c.l.b16 %v1460
      %v1532 = vunpack.c.l.b16 %v1461
      %v1533 = vunpack.c.l.b16 %v1462
      %v1534 = vunpack.c.l.b16 %v1463
      %v1535 = vunpack.c.l.b16 %v1464
      %v1536 = vunpack.c.l.b16 %v1465
      %v1537 = vunpack.c.l.b16 %v1466
      %v1538 = vunpack.c.l.b16 %v1467
      %v1539 = vunpack.c.l.b16 %v1468
      %v1540 = vunpack.c.l.b16 %v1469
      %v1541 = vunpack.c.l.b16 %v1470
      %v1542 = vunpack.c.l.b16 %v1471
      %v1543 = vunpack.c.l.b16 %v1472
      %v1544 = vunpack.c.l.b16 %v1473
      %v1545 = vunpack.c.l.b16 %v1474
      %v1546 = vunpack.c.l.b16 %v1475
      %v1547 = vunpack.c.l.b16 %v1476
      %v1548 = vunpack.c.l.b16 %v1477
      %v1549 = vunpack.c.l.b16 %v1478
      %v1550 = vunpack.c.l.b16 %v1479
      %v1551 = vpack.c.b16 %v1520, %v1519
      %v1552 = vpack.c.b16 %v1522, %v1521
      %v1553 = vpack.c.b16 %v1524, %v1523
      %v1554 = vpack.c.b16 %v1526, %v1525
      %v1555 = vpack.c.b16 %v1528, %v1527
      %v1556 = vpack.c.b16 %v1530, %v1529
      %v1557 = vpack.c.b16 %v1532, %v1531
      %v1558 = vpack.c.b16 %v1534, %v1533
      %v1559 = vpack.c.b16 %v1536, %v1535
      %v1560 = vpack.c.b16 %v1538, %v1537
      %v1561 = vpack.c.b16 %v1540, %v1539
      %v1562 = vpack.c.b16 %v1542, %v1541
      %v1563 = vpack.c.b16 %v1544, %v1543
      %v1564 = vpack.c.b16 %v1546, %v1545
      %v1565 = vpack.c.b16 %v1548, %v1547
      %v1566 = vpack.c.b16 %v1550, %v1549
      %1583 = vmatprep.subr.bf16.mxu0 0
      %1584 = vmatpush1.bf16.msra.mxu0 %v1551
      %1585 = vmatprep.subr.bf16.mxu0 0
      %1586 = vmatpush1.bf16.msra.mxu0 %v1552
      %1587 = vmatprep.subr.bf16.mxu0 0
      %1588 = vmatpush1.bf16.msra.mxu0 %v1553
      %1589 = vmatprep.subr.bf16.mxu0 0
      %1590 = vmatpush1.bf16.msra.mxu0 %v1554
      %1591 = vmatprep.subr.bf16.mxu0 0
      %1592 = vmatpush1.bf16.msra.mxu0 %v1555
      %1593 = vmatprep.subr.bf16.mxu0 0
      %1594 = vmatpush1.bf16.msra.mxu0 %v1556
      %1595 = vmatprep.subr.bf16.mxu0 0
      %1596 = vmatpush1.bf16.msra.mxu0 %v1557
      %1597 = vmatprep.subr.bf16.mxu0 0
      %1598 = vmatpush1.bf16.msra.mxu0 %v1558
      %1599 = vmatprep.subr.bf16.mxu0 0
      %1600 = vmatpush1.bf16.msra.mxu0 %v1559
      %1601 = vmatprep.subr.bf16.mxu0 0
      %1602 = vmatpush1.bf16.msra.mxu0 %v1560
      %1603 = vmatprep.subr.bf16.mxu0 0
      %1604 = vmatpush1.bf16.msra.mxu0 %v1561
      %1605 = vmatprep.subr.bf16.mxu0 0
      %1606 = vmatpush1.bf16.msra.mxu0 %v1562
      %1607 = vmatprep.subr.bf16.mxu0 0
      %1608 = vmatpush1.bf16.msra.mxu0 %v1563
      %1609 = vmatprep.subr.bf16.mxu0 0
      %1610 = vmatpush1.bf16.msra.mxu0 %v1564
      %1611 = vmatprep.subr.bf16.mxu0 0
      %1612 = vmatpush1.bf16.msra.mxu0 %v1565
      %1613 = vmatprep.subr.bf16.mxu0 0
      %1614 = vmatpush1.bf16.msra.mxu0 %v1566
      %1615 = vmatprep.mubr.bf16.mxu0 %v1433
      %1616 = vmatmul.mubr.bf16.gmra.mrb[0].mxu0 %v1432
      %v1617 = vpop.f32.mrb[0].mxu0
      %v1618 = vadd.f32 %v1485, %v1617
      %v1619 = vpop.f32.mrb[0].mxu0
      %v1620 = vpop.f32.mrb[0].mxu0
      %v1621 = vadd.f32 %v1485, %v1620
      %v1622 = vpop.f32.mrb[0].mxu0
      %1623 = vmatprep.mubr.bf16.mxu0 %v1435
      %1624 = vmatmul.mubr.bf16.gmra.mrb[0].mxu0 %v1434
      %v1625 = vpop.f32.mrb[0].mxu0
      %v1626 = vadd.f32 %v1485, %v1625
      %v1627 = vpop.f32.mrb[0].mxu0
      %v1628 = vpop.f32.mrb[0].mxu0
      %v1629 = vadd.f32 %v1485, %v1628
      %v1630 = vpop.f32.mrb[0].mxu0
      %1631 = vmatprep.mubr.bf16.mxu0 %v1437
      %1632 = vmatmul.mubr.bf16.gmra.mrb[0].mxu0 %v1436
      %v1633 = vpop.f32.mrb[0].mxu0
      %v1634 = vadd.f32 %v1485, %v1633
      %v1635 = vpop.f32.mrb[0].mxu0
      %v1636 = vpop.f32.mrb[0].mxu0
      %v1637 = vadd.f32 %v1485, %v1636
      %v1638 = vpop.f32.mrb[0].mxu0
      %1639 = vmatprep.mubr.bf16.mxu0 %v1439
      %1640 = vmatmul.mubr.bf16.gmra.mrb[0].mxu0 %v1438
      %v1641 = vpop.f32.mrb[0].mxu0
      %v1642 = vadd.f32 %v1485, %v1641
      %v1643 = vpop.f32.mrb[0].mxu0
      %v1644 = vpop.f32.mrb[0].mxu0
      %v1645 = vadd.f32 %v1485, %v1644
      %v1646 = vpop.f32.mrb[0].mxu0
      %1647 = vmatprep.mubr.bf16.mxu0 %v1441
      %1648 = vmatmul.mubr.bf16.gmra.mrb[0].mxu0 %v1440
      %v1649 = vpop.f32.mrb[0].mxu0
      %v1650 = vadd.f32 %v1485, %v1649
      %v1651 = vpop.f32.mrb[0].mxu0
      %v1652 = vpop.f32.mrb[0].mxu0
      %v1653 = vadd.f32 %v1485, %v1652
      %v1654 = vpop.f32.mrb[0].mxu0
      %1655 = vmatprep.mubr.bf16.mxu0 %v1443
      %1656 = vmatmul.mubr.bf16.gmra.mrb[0].mxu0 %v1442
      %v1657 = vpop.f32.mrb[0].mxu0
      %v1658 = vadd.f32 %v1485, %v1657
      %v1659 = vpop.f32.mrb[0].mxu0
      %v1660 = vpop.f32.mrb[0].mxu0
      %v1661 = vadd.f32 %v1485, %v1660
      %v1662 = vpop.f32.mrb[0].mxu0
      %1663 = vmatprep.mubr.bf16.mxu0 %v1445
      %1664 = vmatmul.mubr.bf16.gmra.mrb[0].mxu0 %v1444
      %v1665 = vpop.f32.mrb[0].mxu0
      %v1666 = vadd.f32 %v1485, %v1665
      %v1667 = vpop.f32.mrb[0].mxu0
      %v1668 = vpop.f32.mrb[0].mxu0
      %v1669 = vadd.f32 %v1485, %v1668
      %v1670 = vpop.f32.mrb[0].mxu0
      %1671 = vmatprep.mubr.bf16.mxu0 %v1447
      %1672 = vmatmul.mubr.bf16.gmra.mrb[0].mxu0 %v1446
      %v1673 = vpop.f32.mrb[0].mxu0
      %v1674 = vadd.f32 %v1485, %v1673
      %v1675 = vpop.f32.mrb[0].mxu0
      %v1676 = vpop.f32.mrb[0].mxu0
      %v1677 = vadd.f32 %v1485, %v1676
      %v1678 = vpop.f32.mrb[0].mxu0
      %1679 = vdwg.mxu0
      %v1680 = vmax.f32 %v1618, 0.0
      %v1681 = vmax.f32 %v1621, 0.0
      %v1682 = vmax.f32 %v1626, 0.0
      %v1683 = vmax.f32 %v1629, 0.0
      %v1684 = vmax.f32 %v1634, 0.0
      %v1685 = vmax.f32 %v1637, 0.0
      %v1686 = vmax.f32 %v1642, 0.0
      %v1687 = vmax.f32 %v1645, 0.0
      %v1688 = vmax.f32 %v1650, 0.0
      %v1689 = vmax.f32 %v1653, 0.0
      %v1690 = vmax.f32 %v1658, 0.0
      %v1691 = vmax.f32 %v1661, 0.0
      %v1692 = vmax.f32 %v1666, 0.0
      %v1693 = vmax.f32 %v1669, 0.0
      %v1694 = vmax.f32 %v1674, 0.0
      %v1695 = vmax.f32 %v1677, 0.0
      %v1696 = vpack.c.bf16 %v1681, %v1680
      %v1697 = vpack.c.bf16 %v1683, %v1682
      %v1698 = vpack.c.bf16 %v1685, %v1684
      %v1699 = vpack.c.bf16 %v1687, %v1686
      %v1700 = vpack.c.bf16 %v1689, %v1688
      %v1701 = vpack.c.bf16 %v1691, %v1690
      %v1702 = vpack.c.bf16 %v1693, %v1692
      %v1703 = vpack.c.bf16 %v1695, %v1694
      %v1704 = vld [vmem:[%s7] sm:$0xf]
      %v1705 = vld [vmem:[%s7 + $0x4] sm:$0xf]
      %v1706 = vld [vmem:[%s7 + $0x8] sm:$0xf]
      %v1707 = vld [vmem:[%s7 + $0xc] sm:$0xf]
      %v1708 = vld [vmem:[%s7 + $0x10] sm:$0xf]
      %v1709 = vld [vmem:[%s7 + $0x14] sm:$0xf]
      %v1710 = vld [vmem:[%s7 + $0x18] sm:$0xf]
      %v1711 = vld [vmem:[%s7 + $0x1c] sm:$0xf]
      %v1712 = vld [vmem:[%s7 + $0x20] sm:$0xf]
      %v1713 = vld [vmem:[%s7 + $0x24] sm:$0xf]
      %v1714 = vld [vmem:[%s7 + $0x28] sm:$0xf]
      %v1715 = vld [vmem:[%s7 + $0x2c] sm:$0xf]
      %v1716 = vld [vmem:[%s7 + $0x30] sm:$0xf]
      %v1717 = vld [vmem:[%s7 + $0x34] sm:$0xf]
      %v1718 = vld [vmem:[%s7 + $0x38] sm:$0xf]
      %v1719 = vld [vmem:[%s7 + $0x3c] sm:$0xf]
      %v1720 = vld [vmem:[%s8] sm:$0x1]
      %v1722 = vlaneseq
      %v1723 = vshrl.u32 %v1722, 7
      %v1724 = vsub.s32 0, %v1723
      %v1725 = vrot.slane %v1720, %v1724
      %v1743 = vunpack.c.l.b16 %v1704
      %v1744 = vunpack.c.l.b16 %v1705
      %v1745 = vunpack.c.l.b16 %v1706
      %v1746 = vunpack.c.l.b16 %v1707
      %v1747 = vunpack.c.l.b16 %v1708
      %v1748 = vunpack.c.l.b16 %v1709
      %v1749 = vunpack.c.l.b16 %v1710
      %v1750 = vunpack.c.l.b16 %v1711
      %v1751 = vunpack.c.l.b16 %v1712
      %v1752 = vunpack.c.l.b16 %v1713
      %v1753 = vunpack.c.l.b16 %v1714
      %v1754 = vunpack.c.l.b16 %v1715
      %v1755 = vunpack.c.l.b16 %v1716
      %v1756 = vunpack.c.l.b16 %v1717
      %v1757 = vunpack.c.l.b16 %v1718
      %v1758 = vunpack.c.l.b16 %v1719
      %v1759 = vpack.c.b16 %v1744, %v1743
      %v1760 = vpack.c.b16 %v1746, %v1745
      %v1761 = vpack.c.b16 %v1748, %v1747
      %v1762 = vpack.c.b16 %v1750, %v1749
      %v1763 = vpack.c.b16 %v1752, %v1751
      %v1764 = vpack.c.b16 %v1754, %v1753
      %v1765 = vpack.c.b16 %v1756, %v1755
      %v1766 = vpack.c.b16 %v1758, %v1757
      %1775 = vmatprep.subr.bf16.mxu0 0
      %1776 = vmatpush1.bf16.msra.mxu0 %v1759
      %1777 = vmatprep.subr.bf16.mxu0 0
      %1778 = vmatpush1.bf16.msra.mxu0 %v1760
      %1779 = vmatprep.subr.bf16.mxu0 0
      %1780 = vmatpush1.bf16.msra.mxu0 %v1761
      %1781 = vmatprep.subr.bf16.mxu0 0
      %1782 = vmatpush1.bf16.msra.mxu0 %v1762
      %1783 = vmatprep.subr.bf16.mxu0 0
      %1784 = vmatpush1.bf16.msra.mxu0 %v1763
      %1785 = vmatprep.subr.bf16.mxu0 0
      %1786 = vmatpush1.bf16.msra.mxu0 %v1764
      %1787 = vmatprep.subr.bf16.mxu0 0
      %1788 = vmatpush1.bf16.msra.mxu0 %v1765
      %1789 = vmatprep.subr.bf16.mxu0 0
      %1790 = vmatpush1.bf16.msra.mxu0 %v1766
      %1791 = vmatprep.subr.bf16.mxu0 0
      %1792 = vmatpush1.bf16.msra.mxu0 0
      %1793 = vmatprep.subr.bf16.mxu0 0
      %1794 = vmatpush1.bf16.msra.mxu0 0
      %1795 = vmatprep.subr.bf16.mxu0 0
      %1796 = vmatpush1.bf16.msra.mxu0 0
      %1797 = vmatprep.subr.bf16.mxu0 0
      %1798 = vmatpush1.bf16.msra.mxu0 0
      %1799 = vmatprep.subr.bf16.mxu0 0
      %1800 = vmatpush1.bf16.msra.mxu0 0
      %1801 = vmatprep.subr.bf16.mxu0 0
      %1802 = vmatpush1.bf16.msra.mxu0 0
      %1803 = vmatprep.subr.bf16.mxu0 0
      %1804 = vmatpush1.bf16.msra.mxu0 0
      %1805 = vmatprep.subr.bf16.mxu0 0
      %1806 = vmatpush1.bf16.msra.mxu0 0
      %1807 = vmatprep.mubr.bf16.mxu0 0
      %1808 = vmatmul.mubr.bf16.gmra.mrb[0].mxu0 %v1696
      %v1809 = vpop.f32.mrb[0].mxu0
      %v1810 = vadd.f32 %v1725, %v1809
      %v1811 = vpop.f32.mrb[0].mxu0
      %v1812 = vpop.f32.mrb[0].mxu0
      %v1813 = vadd.f32 %v1725, %v1812
      %v1814 = vpop.f32.mrb[0].mxu0
      %1815 = vmatprep.mubr.bf16.mxu0 0
      %1816 = vmatmul.mubr.bf16.gmra.mrb[0].mxu0 %v1697
      %v1817 = vpop.f32.mrb[0].mxu0
      %v1818 = vadd.f32 %v1725, %v1817
      %v1819 = vpop.f32.mrb[0].mxu0
      %v1820 = vpop.f32.mrb[0].mxu0
      %v1821 = vadd.f32 %v1725, %v1820
      %v1822 = vpop.f32.mrb[0].mxu0
      %1823 = vmatprep.mubr.bf16.mxu0 0
      %1824 = vmatmul.mubr.bf16.gmra.mrb[0].mxu0 %v1698
      %v1825 = vpop.f32.mrb[0].mxu0
      %v1826 = vadd.f32 %v1725, %v1825
      %v1827 = vpop.f32.mrb[0].mxu0
      %v1828 = vpop.f32.mrb[0].mxu0
      %v1829 = vadd.f32 %v1725, %v1828
      %v1830 = vpop.f32.mrb[0].mxu0
      %1831 = vmatprep.mubr.bf16.mxu0 0
      %1832 = vmatmul.mubr.bf16.gmra.mrb[0].mxu0 %v1699
      %v1833 = vpop.f32.mrb[0].mxu0
      %v1834 = vadd.f32 %v1725, %v1833
      %v1835 = vpop.f32.mrb[0].mxu0
      %v1836 = vpop.f32.mrb[0].mxu0
      %v1837 = vadd.f32 %v1725, %v1836
      %v1838 = vpop.f32.mrb[0].mxu0
      %1839 = vmatprep.mubr.bf16.mxu0 0
      %1840 = vmatmul.mubr.bf16.gmra.mrb[0].mxu0 %v1700
      %v1841 = vpop.f32.mrb[0].mxu0
      %v1842 = vadd.f32 %v1725, %v1841
      %v1843 = vpop.f32.mrb[0].mxu0
      %v1844 = vpop.f32.mrb[0].mxu0
      %v1845 = vadd.f32 %v1725, %v1844
      %v1846 = vpop.f32.mrb[0].mxu0
      %1847 = vmatprep.mubr.bf16.mxu0 0
      %1848 = vmatmul.mubr.bf16.gmra.mrb[0].mxu0 %v1701
      %v1849 = vpop.f32.mrb[0].mxu0
      %v1850 = vadd.f32 %v1725, %v1849
      %v1851 = vpop.f32.mrb[0].mxu0
      %v1852 = vpop.f32.mrb[0].mxu0
      %v1853 = vadd.f32 %v1725, %v1852
      %v1854 = vpop.f32.mrb[0].mxu0
      %1855 = vmatprep.mubr.bf16.mxu0 0
      %1856 = vmatmul.mubr.bf16.gmra.mrb[0].mxu0 %v1702
      %v1857 = vpop.f32.mrb[0].mxu0
      %v1858 = vadd.f32 %v1725, %v1857
      %v1859 = vpop.f32.mrb[0].mxu0
      %v1860 = vpop.f32.mrb[0].mxu0
      %v1861 = vadd.f32 %v1725, %v1860
      %v1862 = vpop.f32.mrb[0].mxu0
      %1863 = vmatprep.mubr.bf16.mxu0 0
      %1864 = vmatmul.mubr.bf16.gmra.mrb[0].mxu0 %v1703
      %v1865 = vpop.f32.mrb[0].mxu0
      %v1866 = vadd.f32 %v1725, %v1865
      %v1867 = vpop.f32.mrb[0].mxu0
      %v1868 = vpop.f32.mrb[0].mxu0
      %v1869 = vadd.f32 %v1725, %v1868
      %v1870 = vpop.f32.mrb[0].mxu0
      %1871 = vdwg.mxu0
      %1872 = vst [vmem:[%s334] sm:$0xff] %v1810
      %1873 = vst [vmem:[%s334 + $0x8] sm:$0xff] %v1813
      %1874 = vst [vmem:[%s334 + $0x10] sm:$0xff] %v1818
      %1875 = vst [vmem:[%s334 + $0x18] sm:$0xff] %v1821
      %1876 = vst [vmem:[%s334 + $0x20] sm:$0xff] %v1826
      %1877 = vst [vmem:[%s334 + $0x28] sm:$0xff] %v1829
      %1878 = vst [vmem:[%s334 + $0x30] sm:$0xff] %v1834
      %1879 = vst [vmem:[%s334 + $0x38] sm:$0xff] %v1837
      %1880 = vst [vmem:[%s334 + $0x40] sm:$0xff] %v1842
      %1881 = vst [vmem:[%s334 + $0x48] sm:$0xff] %v1845
      %1882 = vst [vmem:[%s334 + $0x50] sm:$0xff] %v1850
      %1883 = vst [vmem:[%s334 + $0x58] sm:$0xff] %v1853
      %1884 = vst [vmem:[%s334 + $0x60] sm:$0xff] %v1858
      %1885 = vst [vmem:[%s334 + $0x68] sm:$0xff] %v1861
      %1886 = vst [vmem:[%s334 + $0x70] sm:$0xff] %v1866
      %1887 = vst [vmem:[%s334 + $0x78] sm:$0xff] %v1869
      %s1888 = smul.u32 16, %s20
      %p1889 = scmp.lt.s32.totalorder %s1888, 31
      %s1890 = scalar_select %p1889, %s1888, 31
      %s1891 = smul.addr %s1890, 8
      %s1892 = scalar_lea.vmem %s9, %s1891
      // Predicated region
      $region57: #{_lambda_.1} parent=55 // pred_check
        %p1893 = pneg %p232
      $region58: #{_lambda_.1} parent=55 // pred_check_branch
        %1895 = sbr.rel (%p1893) target = $region60
      $region59: #{_lambda_.1} parent=55 // pred_region
        %s1896 = smul.u32 16, %s20
      $region60: #{_lambda_.1} parent=55 // pred_fallthru
        _
    $region56: #{_lambda_.1} parent=5 // pred_fallthru
      _
    %p1897 = scmp.le.s32.totalorder 2, %s15
    // Predicated region
    $region61: #{_lambda_.1} parent=5 // pred_check
      %p1898 = pneg %p1897
    $region62: #{_lambda_.1} parent=5 // pred_check_branch
      %1900 = sbr.rel (%p1898) target = $region64
    $region63: #{_lambda_.1} parent=5 // pred_region
      %s1901 = ssub.s32 %s15, 2
      // Predicated region
      $region65: #{_lambda_.1} parent=63 // pred_check
        %p1902 = pneg %p238
      $region66: #{_lambda_.1} parent=63 // pred_check_branch
        %1904 = sbr.rel (%p1902) target = $region68
      $region67: #{_lambda_.1} parent=63 // pred_region
        %s1905 = smul.u32 16, %s21
        %p1906 = scmp.lt.s32.totalorder %s1905, 31
        %s1907 = scalar_select %p1906, %s1905, 31
        %s1908 = smul.addr %s1907, 8
        %s1909 = scalar_lea.vmem %s9, %s1908
      $region68: #{_lambda_.1} parent=63 // pred_fallthru
        _
    $region64: #{_lambda_.1} parent=5 // pred_fallthru
      _
  $region6: #{_lambda_.1} parent=0 // loop_footer
    %s19 = sadd.s32 1, %s15
  $region7: #{_lambda_.1} parent=0 // loop_footer_branch
    %14 = sbr.rel target = $region3
  $region8: #{_lambda_.1} parent=0 // loop_exit
    _

</llo_original>
